<compile_context>
chip_gen: v5e
topology: v5e:2x2
jax: 0.10.0
libtpu: 0.0.40
codegen_flags: <defaults>
</compile_context>

<pallas_src>
import numpy as np
import jax
import jax.numpy as jnp
from jax.scipy.linalg import block_diag
from jax.experimental import pallas as pl
from jax.experimental.pallas import tpu as pltpu


# ----------------------------- configuration -------------------------------
FIELD_DIMS  = (10, 20, 30)     # categorical_field_dims
NUM_NUM     = 4                # numerical_num
EMBED_DIM   = 16               # embed_dim
BOTTOM_DIMS = (32, 16)         # bottom_mlp_dims (expert MLP, no output layer)
TOWER_DIMS  = (16, 8)          # tower_mlp_dims  (tower MLP + output layer -> 1)
TASK_NUM    = 2
EXPERT_NUM  = 3
BATCH       = 256

F = len(FIELD_DIMS)
E = EMBED_DIM
CAT_DIM = F * E                              # 48
EMBED_OUT_DIM = (F + 1) * E                  # 64
X_DIM = 64                                   # kernel input width: [cat || num || 0-pad]
H1 = EXPERT_NUM * BOTTOM_DIMS[0]             # 96  (fused expert layer-1 width)
H2 = EXPERT_NUM * BOTTOM_DIMS[1]             # 48  (stacked expert features)
T1 = TASK_NUM * TOWER_DIMS[0]                # 32  (fused tower layer-1 width)
T2 = TASK_NUM * TOWER_DIMS[1]                # 16  (fused tower layer-2 width)
OUT_PAD = 128                                # lane-dense output width (>= TASK_NUM)

OFFSETS = np.array((0, *np.cumsum(FIELD_DIMS)[:-1]), dtype=np.int32)

# slab column panels: every matrix/bias starts at a 128-lane boundary so all in-kernel
# slices are static and lane-aligned.
C_WE1, C_WG, C_WE2, C_EXP, C_WT1, C_WT2, C_WOUT = (k * 128 for k in range(7))
W_ROWS = 96                                  # max contraction dim (bf16 sublane-tile mult)
W_COLS = 7 * 128

assert CAT_DIM + NUM_NUM <= X_DIM and X_DIM % 16 == 0
assert max(X_DIM, H1, H2, T1, T2) <= W_ROWS and W_ROWS % 16 == 0
assert TASK_NUM <= OUT_PAD


# ------------------------------- kernel ------------------------------------
def omoe_kernel(x_ref, w_ref, b_ref, out_ref):
    f32, bf16 = jnp.float32, jnp.bfloat16
    x = x_ref[...]                                            # (TB, X_DIM) bf16

    # one-gate softmax over experts (numerical Linear folded into the packed weights)
    g_logits = (jnp.dot(x, w_ref[0:X_DIM, C_WG:C_WG + EXPERT_NUM],
                        preferred_element_type=f32)
                + b_ref[:, C_WG:C_WG + EXPERT_NUM])           # (TB, EXPERT_NUM)
    g_max = jnp.max(g_logits, axis=1, keepdims=True)
    g_exp = jnp.exp(g_logits - g_max)
    gate = g_exp * pl.reciprocal(jnp.sum(g_exp, axis=1, keepdims=True), approx=True)

    # experts: layer 1 wide-fused across experts, layer 2 block-diagonal (BN folded, ReLU)
    h1 = jnp.maximum(
        jnp.dot(x, w_ref[0:X_DIM, C_WE1:C_WE1 + H1], preferred_element_type=f32)
        + b_ref[:, C_WE1:C_WE1 + H1], 0.0)                    # (TB, H1)
    h2 = jnp.maximum(
        jnp.dot(h1.astype(bf16), w_ref[0:H1, C_WE2:C_WE2 + H2],
                preferred_element_type=f32)
        + b_ref[:, C_WE2:C_WE2 + H2], 0.0)                    # (TB, H2) stacked expert fea

    # expert mixture: 0/1 expansion matmul broadcasts each gate value over its expert
    # block; the expert-sum matrix is folded into the tower layer-1 weight below.
    gate_wide = jnp.dot(gate, w_ref[0:EXPERT_NUM, C_EXP:C_EXP + H2].astype(f32),
                        preferred_element_type=f32)           # (TB, H2)
    mix = gate_wide * h2

    # towers: layer 1 wide-fused (expert-sum folded in), layer 2 block-diagonal,
    # fused zero-padded output layer -> lane-dense (TB, 128) store.
    t1 = jnp.maximum(
        jnp.dot(mix.astype(bf16), w_ref[0:H2, C_WT1:C_WT1 + T1],
                preferred_element_type=f32)
        + b_ref[:, C_WT1:C_WT1 + T1], 0.0)                    # (TB, T1)
    t2 = jnp.maximum(
        jnp.dot(t1.astype(bf16), w_ref[0:T1, C_WT2:C_WT2 + T2],
                preferred_element_type=f32)
        + b_ref[:, C_WT2:C_WT2 + T2], 0.0)                    # (TB, T2)
    logits = (jnp.dot(t2.astype(bf16), w_ref[0:T2, C_WOUT:C_WOUT + OUT_PAD],
                      preferred_element_type=f32)
              + b_ref[:, C_WOUT:C_WOUT + OUT_PAD])            # (TB, OUT_PAD)
    out_ref[...] = (1.0 / (1.0 + jnp.exp(-logits))).astype(out_ref.dtype)


# --------------------------- parameter helpers ------------------------------
def _fold_bn(w, b, gamma, beta, mean, var, eps=1e-5):
    """Fold BatchNorm1d (running stats) into the preceding Linear (stacked over copies)."""
    scale = gamma / jnp.sqrt(var + eps)                       # (..., out)
    return w * scale[..., :, None], (b - mean) * scale + beta


def init_params(seed=0):
    keys = iter(jax.random.split(jax.random.PRNGKey(seed), 64))

    def rnd(shape, scale=0.1):
        return jax.random.normal(next(keys), shape, jnp.float32) * scale

    def mlp_layers(n_copies, in_dim, dims):
        layers = []
        for out_dim in dims:
            layers.append(dict(
                w=rnd((n_copies, out_dim, in_dim)),
                b=rnd((n_copies, out_dim), 0.01),
                g=1.0 + rnd((n_copies, out_dim), 0.05),
                beta=rnd((n_copies, out_dim), 0.05),
                m=rnd((n_copies, out_dim), 0.05),
                v=1.0 + jnp.abs(rnd((n_copies, out_dim), 0.1)),
            ))
            in_dim = out_dim
        return layers

    p = {}
    p["embed"]  = rnd((sum(FIELD_DIMS), E))
    p["num_w"]  = rnd((E, NUM_NUM))
    p["num_b"]  = rnd((E,), 0.01)
    p["gate_w"] = rnd((EXPERT_NUM, EMBED_OUT_DIM))
    p["gate_b"] = rnd((EXPERT_NUM,), 0.01)
    p["expert"] = mlp_layers(EXPERT_NUM, EMBED_OUT_DIM, BOTTOM_DIMS)
    p["tower"]  = mlp_layers(TASK_NUM, BOTTOM_DIMS[-1], TOWER_DIMS)
    p["tower_out_w"] = rnd((TASK_NUM, 1, TOWER_DIMS[-1]))
    p["tower_out_b"] = rnd((TASK_NUM, 1), 0.01)
    return p


def pack_kernel_weights(p):
    """Runs ONCE at setup (outside jit): fold BN + numerical Linear + expert-sum
    algebraically, fuse experts/towers into wide / block-diagonal matrices, and pack
    everything into one bf16 weight slab + one f32 bias slab (2 DMAs instead of ~20)."""
    f32 = jnp.float32
    wn = p["num_w"].T                                         # (NUM_NUM, E)
    bn = p["num_b"]                                           # (E,)

    def fold_num(w_full, n_out):
        """(EMBED_OUT_DIM, n_out) weight acting on [cat || num_emb]  ->
        ((X_DIM, n_out) weight acting on [cat || num || 0-pad], extra bias)."""
        w_cat, w_num = w_full[:CAT_DIM], w_full[CAT_DIM:]
        w_x = jnp.zeros((X_DIM, n_out), f32)
        w_x = w_x.at[:CAT_DIM].set(w_cat)
        w_x = w_x.at[CAT_DIM:CAT_DIM + NUM_NUM].set(wn @ w_num)
        return w_x, bn @ w_num

    # gate
    wg, bg_extra = fold_num(p["gate_w"].T, EXPERT_NUM)
    bg = p["gate_b"] + bg_extra

    # experts: layer 0 wide-fused, layer 1 block-diagonal (BN folded)
    l0, l1 = p["expert"]
    w0, b0 = _fold_bn(l0["w"], l0["b"], l0["g"], l0["beta"], l0["m"], l0["v"])
    w1, b1 = _fold_bn(l1["w"], l1["b"], l1["g"], l1["beta"], l1["m"], l1["v"])
    we1_full = jnp.transpose(w0, (2, 0, 1)).reshape(EMBED_OUT_DIM, H1)
    we1, be1_extra = fold_num(we1_full, H1)
    be1 = b0.reshape(-1) + be1_extra
    we2 = block_diag(*[w1[e].T for e in range(EXPERT_NUM)])   # (H1, H2)
    be2 = b1.reshape(-1)

    # gate 0/1 expansion (broadcast gate over each expert's BOTTOM_DIMS[-1] outputs)
    expand = block_diag(*([jnp.ones((1, BOTTOM_DIMS[-1]), f32)] * EXPERT_NUM))  # (E_NUM, H2)

    # towers: layer 0 wide-fused with the expert-sum folded in, layer 1 block-diagonal
    t0, t1l = p["tower"]
    tw0, tb0 = _fold_bn(t0["w"], t0["b"], t0["g"], t0["beta"], t0["m"], t0["v"])
    tw1, tb1 = _fold_bn(t1l["w"], t1l["b"], t1l["g"], t1l["beta"], t1l["m"], t1l["v"])
    wt1_small = jnp.transpose(tw0, (2, 0, 1)).reshape(BOTTOM_DIMS[-1], T1)      # (16, T1)
    wt1 = jnp.tile(wt1_small, (EXPERT_NUM, 1))                # summ folded in -> (H2, T1)
    bt1 = tb0.reshape(-1)
    wt2 = block_diag(*[tw1[t].T for t in range(TASK_NUM)])    # (T1, T2)
    bt2 = tb1.reshape(-1)
    wout = block_diag(*[p["tower_out_w"][t].T for t in range(TASK_NUM)])  # (T2, TASK_NUM)
    bout = p["tower_out_b"].reshape(-1)

    # pack into one bf16 weight slab + one f32 bias slab (panel-aligned columns)
    w_slab = jnp.zeros((W_ROWS, W_COLS), f32)
    b_slab = jnp.zeros((1, W_COLS), f32)
    for col, w, b in ((C_WE1, we1, be1), (C_WG, wg, bg), (C_WE2, we2, be2),
                      (C_EXP, expand, None), (C_WT1, wt1, bt1),
                      (C_WT2, wt2, bt2), (C_WOUT, wout, bout)):
        r, c = w.shape
        w_slab = w_slab.at[:r, col:col + c].set(w)
        if b is not None:
            b_slab = b_slab.at[0, col:col + b.shape[0]].set(b)
    return w_slab.astype(jnp.bfloat16), b_slab


# ------------------------------ wrapper -------------------------------------
def _choose_tile(batch):
    """Largest batch tile (<=512) dividing `batch`; keep >=2 grid steps on a
    dual-TensorCore part (v7x) so both cores get work; 1 step on v5e/v6e."""
    try:
        kind = jax.devices()[0].device_kind.lower()
    except Exception:
        kind = ""
    min_steps = 2 if "v7" in kind else 1
    for tile in (512, 256, 128, 64, 32, 16, 8):
        if batch % tile == 0 and batch // tile >= min_steps:
            return tile
    return batch


def _omoe_forward(categorical_x, numerical_x, embed_table, w_slab, b_slab):
    B = categorical_x.shape[0]
    # EmbeddingLayer: offsets + gather (XLA glue; data-dependent gather stays outside)
    idx = categorical_x + jnp.asarray(OFFSETS)[None, :]
    cat_flat = embed_table[idx].reshape(B, CAT_DIM)           # (B, F*E)
    # kernel input = [cat_emb || numerical || zero-pad] in bf16; the numerical Linear
    # is folded into the packed weights, so no num_emb dot is needed in-kernel.
    x = jnp.concatenate(
        [cat_flat, numerical_x,
         jnp.zeros((B, X_DIM - CAT_DIM - NUM_NUM), cat_flat.dtype)],
        axis=1).astype(jnp.bfloat16)

    tile_b = _choose_tile(B)
    grid = (B // tile_b,)

    out = pl.pallas_call(
        omoe_kernel,
        out_shape=jax.ShapeDtypeStruct((B, OUT_PAD), jnp.bfloat16),
        grid=grid,
        in_specs=[
            pl.BlockSpec((tile_b, X_DIM), lambda i: (i, 0)),
            # weight/bias slabs: constant index map -> VMEM-resident across grid steps
            pl.BlockSpec((W_ROWS, W_COLS), lambda i: (0, 0)),
            pl.BlockSpec((1, W_COLS), lambda i: (0, 0)),
        ],
        out_specs=pl.BlockSpec((tile_b, OUT_PAD), lambda i: (i, 0)),
        compiler_params=pltpu.CompilerParams(dimension_semantics=("parallel",)),
    )(x, w_slab, b_slab)

    # single slice: only the first TASK_NUM lanes are meaningful (lane padding = 0.5)
    return out[:, :TASK_NUM].astype(jnp.float32)              # (B, TASK_NUM)


omoe_forward = jax.jit(_omoe_forward)


# --------------------------- pure-JAX reference ------------------------------
def _bn_inference(x, g, beta, m, v, eps=1e-5):
    return (x - m) / jnp.sqrt(v + eps) * g + beta


def omoe_reference(categorical_x, numerical_x, p):
    B = categorical_x.shape[0]
    idx = categorical_x + jnp.asarray(OFFSETS)[None, :]
    cat_emb = p["embed"][idx]                                 # (B, F, E)
    num_emb = numerical_x @ p["num_w"].T + p["num_b"]         # (B, E)
    emb = jnp.concatenate([cat_emb, num_emb[:, None, :]], axis=1).reshape(B, -1)

    gate = jax.nn.softmax(emb @ p["gate_w"].T + p["gate_b"], axis=1)   # (B, expert_num)

    feas = []
    for e in range(EXPERT_NUM):
        h = emb
        for layer in p["expert"]:
            h = h @ layer["w"][e].T + layer["b"][e]
            h = _bn_inference(h, layer["g"][e], layer["beta"][e], layer["m"][e], layer["v"][e])
            h = jax.nn.relu(h)
        feas.append(h)
    fea = jnp.stack(feas, axis=1)                             # (B, expert_num, bottom_last)
    mix = jnp.einsum("be,bed->bd", gate, fea)                 # (B, bottom_last)

    results = []
    for t in range(TASK_NUM):
        h = mix
        for layer in p["tower"]:
            h = h @ layer["w"][t].T + layer["b"][t]
            h = _bn_inference(h, layer["g"][t], layer["beta"][t], layer["m"][t], layer["v"][t])
            h = jax.nn.relu(h)
        logit = h @ p["tower_out_w"][t].T + p["tower_out_b"][t]   # (B, 1)
        results.append(jax.nn.sigmoid(logit[:, 0]))
    return results


# --------------------------------- main --------------------------------------
if __name__ == "__main__":
    params = init_params(seed=0)
    # hoisted out of the per-call jitted path: pack once, reuse every forward
    w_slab, b_slab = pack_kernel_weights(params)

    k1, k2 = jax.random.split(jax.random.PRNGKey(0))
    categorical_x = jnp.stack(
        [jax.random.randint(jax.random.fold_in(k1, f), (BATCH,), 0, FIELD_DIMS[f])
         for f in range(F)], axis=1).astype(jnp.int32)        # (B, F)
    numerical_x = jax.random.normal(k2, (BATCH, NUM_NUM), jnp.float32)

    out2d = omoe_forward(categorical_x, numerical_x, params["embed"], w_slab, b_slab)
    out2d = jax.block_until_ready(out2d)
    outs = [out2d[:, t] for t in range(TASK_NUM)]             # list of (B,), like PyTorch

    refs = omoe_reference(categorical_x, numerical_x, params)
    for o, r in zip(outs, refs):
        np.testing.assert_allclose(np.asarray(o), np.asarray(r), rtol=2e-2, atol=5e-3)

    print("KERNEL_OK")
</pallas_src>

<mosaic_0001>
module attributes {stable_mosaic.version = 11 : i64} {
  func.func @omoe_kernel(%arg0: i32, %arg1: memref<256x64xbf16, #tpu.memory_space<vmem>>, %arg2: memref<96x896xbf16, #tpu.memory_space<vmem>>, %arg3: memref<1x896xf32, #tpu.memory_space<vmem>>, %arg4: memref<256x128xbf16, #tpu.memory_space<vmem>>) attributes {dimension_semantics = [#tpu.dimension_semantics<parallel>], iteration_bounds = array<i64: 1>, scalar_prefetch = 0 : i64, scratch_operands = 0 : i64, tpu.core_type = #tpu.core_type<tc>, window_params = [{transform_indices = @transform_0, window_bounds = array<i64: 256, 64>}, {pipeline_mode = #tpu.pipeline_mode<synchronous>, transform_indices = @transform_1, window_bounds = array<i64: 96, 896>}, {pipeline_mode = #tpu.pipeline_mode<synchronous>, transform_indices = @transform_2, window_bounds = array<i64: 1, 896>}, {transform_indices = @transform_3, window_bounds = array<i64: 256, 128>}]} {
    %c0 = arith.constant 0 : index
    %c0_0 = arith.constant 0 : index
    %0 = vector.load %arg1[%c0, %c0_0] : memref<256x64xbf16, #tpu.memory_space<vmem>>, vector<256x64xbf16>
    %c0_1 = arith.constant 0 : index
    %c128 = arith.constant 128 : index
    %1 = vector.load %arg2[%c0_1, %c128] : memref<96x896xbf16, #tpu.memory_space<vmem>>, vector<64x3xbf16>
    %cst = arith.constant dense<0.000000e+00> : vector<256x3xf32>
    %2 = tpu.matmul %0, %1, %cst {dimension_numbers = #tpu.dot_dimension_numbers<[1], [0], [0], [1], [0, 0, 1, 1], [], []>} : vector<256x64xbf16>, vector<64x3xbf16>, vector<256x3xf32> -> vector<256x3xf32>
    %c0_2 = arith.constant 0 : index
    %c128_3 = arith.constant 128 : index
    %3 = vector.load %arg3[%c0_2, %c128_3] : memref<1x896xf32, #tpu.memory_space<vmem>>, vector<1x3xf32>
    %4 = vector.broadcast %3 : vector<1x3xf32> to vector<256x3xf32>
    %5 = arith.addf %2, %4 : vector<256x3xf32>
    %cst_4 = arith.constant dense<0xFF800000> : vector<256xf32>
    %6 = vector.multi_reduction <maximumf>, %5, %cst_4 [1] : vector<256x3xf32> to vector<256xf32>
    %7 = vector.shape_cast %6 : vector<256xf32> to vector<256x1xf32>
    %8 = vector.broadcast %7 : vector<256x1xf32> to vector<256x3xf32>
    %9 = arith.subf %5, %8 : vector<256x3xf32>
    %10 = math.exp %9 : vector<256x3xf32>
    %cst_5 = arith.constant dense<0.000000e+00> : vector<256xf32>
    %11 = vector.multi_reduction <add>, %10, %cst_5 [1] : vector<256x3xf32> to vector<256xf32>
    %12 = vector.shape_cast %11 : vector<256xf32> to vector<256x1xf32>
    %13 = tpu.reciprocal %12 {approx = true} : vector<256x1xf32> -> vector<256x1xf32>
    %14 = vector.broadcast %13 : vector<256x1xf32> to vector<256x3xf32>
    %15 = arith.mulf %10, %14 : vector<256x3xf32>
    %c0_6 = arith.constant 0 : index
    %c0_7 = arith.constant 0 : index
    %16 = vector.load %arg2[%c0_6, %c0_7] : memref<96x896xbf16, #tpu.memory_space<vmem>>, vector<64x96xbf16>
    %cst_8 = arith.constant dense<0.000000e+00> : vector<256x96xf32>
    %17 = tpu.matmul %0, %16, %cst_8 {dimension_numbers = #tpu.dot_dimension_numbers<[1], [0], [0], [1], [0, 0, 1, 1], [], []>} : vector<256x64xbf16>, vector<64x96xbf16>, vector<256x96xf32> -> vector<256x96xf32>
    %c0_9 = arith.constant 0 : index
    %c0_10 = arith.constant 0 : index
    %18 = vector.load %arg3[%c0_9, %c0_10] : memref<1x896xf32, #tpu.memory_space<vmem>>, vector<1x96xf32>
    %19 = vector.broadcast %18 : vector<1x96xf32> to vector<256x96xf32>
    %20 = arith.addf %17, %19 : vector<256x96xf32>
    %cst_11 = arith.constant 0.000000e+00 : f32
    %21 = vector.broadcast %cst_11 : f32 to vector<256x96xf32>
    %22 = arith.maximumf %20, %21 : vector<256x96xf32>
    %23 = arith.truncf %22 : vector<256x96xf32> to vector<256x96xbf16>
    %c0_12 = arith.constant 0 : index
    %c256 = arith.constant 256 : index
    %24 = vector.load %arg2[%c0_12, %c256] : memref<96x896xbf16, #tpu.memory_space<vmem>>, vector<96x48xbf16>
    %cst_13 = arith.constant dense<0.000000e+00> : vector<256x48xf32>
    %25 = tpu.matmul %23, %24, %cst_13 {dimension_numbers = #tpu.dot_dimension_numbers<[1], [0], [0], [1], [0, 0, 1, 1], [], []>} : vector<256x96xbf16>, vector<96x48xbf16>, vector<256x48xf32> -> vector<256x48xf32>
    %c0_14 = arith.constant 0 : index
    %c256_15 = arith.constant 256 : index
    %26 = vector.load %arg3[%c0_14, %c256_15] : memref<1x896xf32, #tpu.memory_space<vmem>>, vector<1x48xf32>
    %27 = vector.broadcast %26 : vector<1x48xf32> to vector<256x48xf32>
    %28 = arith.addf %25, %27 : vector<256x48xf32>
    %cst_16 = arith.constant 0.000000e+00 : f32
    %29 = vector.broadcast %cst_16 : f32 to vector<256x48xf32>
    %30 = arith.maximumf %28, %29 : vector<256x48xf32>
    %c0_17 = arith.constant 0 : index
    %c384 = arith.constant 384 : index
    %31 = vector.load %arg2[%c0_17, %c384] : memref<96x896xbf16, #tpu.memory_space<vmem>>, vector<3x48xbf16>
    %32 = arith.extf %31 : vector<3x48xbf16> to vector<3x48xf32>
    %cst_18 = arith.constant dense<0.000000e+00> : vector<256x48xf32>
    %33 = tpu.matmul %15, %32, %cst_18 {dimension_numbers = #tpu.dot_dimension_numbers<[1], [0], [0], [1], [0, 0, 1, 1], [], []>} : vector<256x3xf32>, vector<3x48xf32>, vector<256x48xf32> -> vector<256x48xf32>
    %34 = arith.mulf %33, %30 : vector<256x48xf32>
    %35 = arith.truncf %34 : vector<256x48xf32> to vector<256x48xbf16>
    %c0_19 = arith.constant 0 : index
    %c512 = arith.constant 512 : index
    %36 = vector.load %arg2[%c0_19, %c512] : memref<96x896xbf16, #tpu.memory_space<vmem>>, vector<48x32xbf16>
    %cst_20 = arith.constant dense<0.000000e+00> : vector<256x32xf32>
    %37 = tpu.matmul %35, %36, %cst_20 {dimension_numbers = #tpu.dot_dimension_numbers<[1], [0], [0], [1], [0, 0, 1, 1], [], []>} : vector<256x48xbf16>, vector<48x32xbf16>, vector<256x32xf32> -> vector<256x32xf32>
    %c0_21 = arith.constant 0 : index
    %c512_22 = arith.constant 512 : index
    %38 = vector.load %arg3[%c0_21, %c512_22] : memref<1x896xf32, #tpu.memory_space<vmem>>, vector<1x32xf32>
    %39 = vector.broadcast %38 : vector<1x32xf32> to vector<256x32xf32>
    %40 = arith.addf %37, %39 : vector<256x32xf32>
    %cst_23 = arith.constant 0.000000e+00 : f32
    %41 = vector.broadcast %cst_23 : f32 to vector<256x32xf32>
    %42 = arith.maximumf %40, %41 : vector<256x32xf32>
    %43 = arith.truncf %42 : vector<256x32xf32> to vector<256x32xbf16>
    %c0_24 = arith.constant 0 : index
    %c640 = arith.constant 640 : index
    %44 = vector.load %arg2[%c0_24, %c640] : memref<96x896xbf16, #tpu.memory_space<vmem>>, vector<32x16xbf16>
    %cst_25 = arith.constant dense<0.000000e+00> : vector<256x16xf32>
    %45 = tpu.matmul %43, %44, %cst_25 {dimension_numbers = #tpu.dot_dimension_numbers<[1], [0], [0], [1], [0, 0, 1, 1], [], []>} : vector<256x32xbf16>, vector<32x16xbf16>, vector<256x16xf32> -> vector<256x16xf32>
    %c0_26 = arith.constant 0 : index
    %c640_27 = arith.constant 640 : index
    %46 = vector.load %arg3[%c0_26, %c640_27] : memref<1x896xf32, #tpu.memory_space<vmem>>, vector<1x16xf32>
    %47 = vector.broadcast %46 : vector<1x16xf32> to vector<256x16xf32>
    %48 = arith.addf %45, %47 : vector<256x16xf32>
    %cst_28 = arith.constant 0.000000e+00 : f32
    %49 = vector.broadcast %cst_28 : f32 to vector<256x16xf32>
    %50 = arith.maximumf %48, %49 : vector<256x16xf32>
    %51 = arith.truncf %50 : vector<256x16xf32> to vector<256x16xbf16>
    %c0_29 = arith.constant 0 : index
    %c768 = arith.constant 768 : index
    %52 = vector.load %arg2[%c0_29, %c768] : memref<96x896xbf16, #tpu.memory_space<vmem>>, vector<16x128xbf16>
    %cst_30 = arith.constant dense<0.000000e+00> : vector<256x128xf32>
    %53 = tpu.matmul %51, %52, %cst_30 {dimension_numbers = #tpu.dot_dimension_numbers<[1], [0], [0], [1], [0, 0, 1, 1], [], []>} : vector<256x16xbf16>, vector<16x128xbf16>, vector<256x128xf32> -> vector<256x128xf32>
    %c0_31 = arith.constant 0 : index
    %c768_32 = arith.constant 768 : index
    %54 = vector.load %arg3[%c0_31, %c768_32] : memref<1x896xf32, #tpu.memory_space<vmem>>, vector<1x128xf32>
    %55 = vector.broadcast %54 : vector<1x128xf32> to vector<256x128xf32>
    %56 = arith.addf %53, %55 : vector<256x128xf32>
    %cst_33 = arith.constant 0.000000e+00 : f32
    %57 = vector.broadcast %cst_33 : f32 to vector<256x128xf32>
    %58 = arith.subf %57, %56 : vector<256x128xf32>
    %59 = math.exp %58 : vector<256x128xf32>
    %cst_34 = arith.constant 1.000000e+00 : f32
    %60 = vector.broadcast %cst_34 : f32 to vector<256x128xf32>
    %61 = arith.addf %60, %59 : vector<256x128xf32>
    %cst_35 = arith.constant 1.000000e+00 : f32
    %62 = vector.broadcast %cst_35 : f32 to vector<256x128xf32>
    %63 = arith.divf %62, %61 : vector<256x128xf32>
    %64 = arith.truncf %63 : vector<256x128xf32> to vector<256x128xbf16>
    %c0_36 = arith.constant 0 : index
    %c0_37 = arith.constant 0 : index
    %65 = vector.load %arg4[%c0_36, %c0_37] : memref<256x128xbf16, #tpu.memory_space<vmem>>, vector<256x128xbf16>
    tpu.vector_store %arg4[%c0_36, %c0_37], %64 {strides = array<i32>} : memref<256x128xbf16, #tpu.memory_space<vmem>>, vector<256x128xbf16>,
    return
  }
  func.func @transform_0(%arg0: i32) -> (i32, i32) {
    %c0_i32 = arith.constant 0 : i32
    %c0_i32_0 = arith.constant 0 : i32
    return %arg0, %c0_i32 : i32, i32
  }
  func.func @transform_1(%arg0: i32) -> (i32, i32) {
    %c0_i32 = arith.constant 0 : i32
    %c0_i32_0 = arith.constant 0 : i32
    %c0_i32_1 = arith.constant 0 : i32
    return %c0_i32, %c0_i32_0 : i32, i32
  }
  func.func @transform_2(%arg0: i32) -> (i32, i32) {
    %c0_i32 = arith.constant 0 : i32
    %c0_i32_0 = arith.constant 0 : i32
    %c0_i32_1 = arith.constant 0 : i32
    return %c0_i32, %c0_i32_0 : i32, i32
  }
  func.func @transform_3(%arg0: i32) -> (i32, i32) {
    %c0_i32 = arith.constant 0 : i32
    %c0_i32_0 = arith.constant 0 : i32
    return %arg0, %c0_i32 : i32, i32
  }
}

</mosaic_0001>

<llo_original>
// kernel: _omoe_forward.1
$region0: #{_omoe_forward.1}
  #allocation0 [shape = 'u32[]', space=smem, size = 0x4, offset = 0x4, fixed_abs, tag = 'smem constant byte address 0x4 - core index']
  #allocation1 [shape = 'u32[72,128]{1,0:T(1,128)}', space=vmem, size = 0x9000, scoped, tag = 'internal scratch']
  %s0 = inlined_call_operand.vmem [shape: bf16[256,64], index: 0, kind: input, shape index: {}]
  %s1 = inlined_call_operand.vmem [shape: bf16[96,896], index: 1, kind: input, shape index: {}]
  %s2 = inlined_call_operand.vmem [shape: f32[1,896], index: 2, kind: input, shape index: {}]
  %s3 = inlined_call_operand.vmem [shape: bf16[256,128], index: 3, kind: output, shape index: {}]
  %s4 = sld [smem:[#allocation0]]
  $region22: #{_omoe_forward.1} parent=0
    _
  %s6 = ssub.s32 1, %s4
  %s7 = scalar_select 0, %s6, %s4
  // Predicated region
  $region2: #{_omoe_forward.1} parent=0 // pred_check
    _
  $region3: #{_omoe_forward.1} parent=0 // pred_check_branch
    %9 = sbr.rel (0) target = $region5
  $region4: #{_omoe_forward.1} parent=0 // pred_region
    _
  $region5: #{_omoe_forward.1} parent=0 // pred_fallthru
    _
  // Predicated region
  $region6: #{_omoe_forward.1} parent=0 // pred_check
    _
  $region7: #{_omoe_forward.1} parent=0 // pred_check_branch
    %11 = sbr.rel (0) target = $region9
  $region8: #{_omoe_forward.1} parent=0 // pred_region
    _
  $region9: #{_omoe_forward.1} parent=0 // pred_fallthru
    _
  // Predicated region
  $region10: #{_omoe_forward.1} parent=0 // pred_check
    _
  $region11: #{_omoe_forward.1} parent=0 // pred_check_branch
    %13 = sbr.rel (0) target = $region13
  $region12: #{_omoe_forward.1} parent=0 // pred_region
    _
  $region13: #{_omoe_forward.1} parent=0 // pred_fallthru
    _
  %v15 = vld [vmem:[%s0] sm:$0xf]
  %v16 = vld [vmem:[%s0 + $0x4] sm:$0xf]
  %v17 = vld [vmem:[%s0 + $0x8] sm:$0xf]
  %v18 = vld [vmem:[%s0 + $0xc] sm:$0xf]
  %v19 = vld [vmem:[%s0 + $0x10] sm:$0xf]
  %v20 = vld [vmem:[%s0 + $0x14] sm:$0xf]
  %v21 = vld [vmem:[%s0 + $0x18] sm:$0xf]
  %v22 = vld [vmem:[%s0 + $0x1c] sm:$0xf]
  %v23 = vld [vmem:[%s0 + $0x20] sm:$0xf]
  %v24 = vld [vmem:[%s0 + $0x24] sm:$0xf]
  %v25 = vld [vmem:[%s0 + $0x28] sm:$0xf]
  %v26 = vld [vmem:[%s0 + $0x2c] sm:$0xf]
  %v27 = vld [vmem:[%s0 + $0x30] sm:$0xf]
  %v28 = vld [vmem:[%s0 + $0x34] sm:$0xf]
  %v29 = vld [vmem:[%s0 + $0x38] sm:$0xf]
  %v30 = vld [vmem:[%s0 + $0x3c] sm:$0xf]
  %v31 = vld [vmem:[%s0 + $0x40] sm:$0xf]
  %v32 = vld [vmem:[%s0 + $0x44] sm:$0xf]
  %v33 = vld [vmem:[%s0 + $0x48] sm:$0xf]
  %v34 = vld [vmem:[%s0 + $0x4c] sm:$0xf]
  %v35 = vld [vmem:[%s0 + $0x50] sm:$0xf]
  %v36 = vld [vmem:[%s0 + $0x54] sm:$0xf]
  %v37 = vld [vmem:[%s0 + $0x58] sm:$0xf]
  %v38 = vld [vmem:[%s0 + $0x5c] sm:$0xf]
  %v39 = vld [vmem:[%s0 + $0x60] sm:$0xf]
  %v40 = vld [vmem:[%s0 + $0x64] sm:$0xf]
  %v41 = vld [vmem:[%s0 + $0x68] sm:$0xf]
  %v42 = vld [vmem:[%s0 + $0x6c] sm:$0xf]
  %v43 = vld [vmem:[%s0 + $0x70] sm:$0xf]
  %v44 = vld [vmem:[%s0 + $0x74] sm:$0xf]
  %v45 = vld [vmem:[%s0 + $0x78] sm:$0xf]
  %v46 = vld [vmem:[%s0 + $0x7c] sm:$0xf]
  %v47 = vld [vmem:[%s1 + $0x4] sm:$0xf]
  %v48 = vld [vmem:[%s1 + $0x20] sm:$0xf]
  %v49 = vld [vmem:[%s1 + $0x3c] sm:$0xf]
  %v50 = vld [vmem:[%s1 + $0x58] sm:$0xf]
  %v51 = vld [vmem:[%s1 + $0x74] sm:$0xf]
  %v52 = vld [vmem:[%s1 + $0x90] sm:$0xf]
  %v53 = vld [vmem:[%s1 + $0xac] sm:$0xf]
  %v54 = vld [vmem:[%s1 + $0xc8] sm:$0xf]
  %v55 = vld [vmem:[%s2 + $0x1] sm:$0x1]
  %v57 = vperm.slane %v55, 0
  %v91 = vunpack.c.l.b16 %v15
  %v92 = vunpack.c.l.b16 %v16
  %v93 = vunpack.c.l.b16 %v17
  %v94 = vunpack.c.l.b16 %v18
  %v95 = vunpack.c.l.b16 %v19
  %v96 = vunpack.c.l.b16 %v20
  %v97 = vunpack.c.l.b16 %v21
  %v98 = vunpack.c.l.b16 %v22
  %v99 = vunpack.c.l.b16 %v23
  %v100 = vunpack.c.l.b16 %v24
  %v101 = vunpack.c.l.b16 %v25
  %v102 = vunpack.c.l.b16 %v26
  %v103 = vunpack.c.l.b16 %v27
  %v104 = vunpack.c.l.b16 %v28
  %v105 = vunpack.c.l.b16 %v29
  %v106 = vunpack.c.l.b16 %v30
  %v107 = vunpack.c.l.b16 %v31
  %v108 = vunpack.c.l.b16 %v32
  %v109 = vunpack.c.l.b16 %v33
  %v110 = vunpack.c.l.b16 %v34
  %v111 = vunpack.c.l.b16 %v35
  %v112 = vunpack.c.l.b16 %v36
  %v113 = vunpack.c.l.b16 %v37
  %v114 = vunpack.c.l.b16 %v38
  %v115 = vunpack.c.l.b16 %v39
  %v116 = vunpack.c.l.b16 %v40
  %v117 = vunpack.c.l.b16 %v41
  %v118 = vunpack.c.l.b16 %v42
  %v119 = vunpack.c.l.b16 %v43
  %v120 = vunpack.c.l.b16 %v44
  %v121 = vunpack.c.l.b16 %v45
  %v122 = vunpack.c.l.b16 %v46
  %v123 = vpack.c.b16 %v92, %v91
  %v124 = vpack.c.b16 %v94, %v93
  %v125 = vpack.c.b16 %v96, %v95
  %v126 = vpack.c.b16 %v98, %v97
  %v127 = vpack.c.b16 %v100, %v99
  %v128 = vpack.c.b16 %v102, %v101
  %v129 = vpack.c.b16 %v104, %v103
  %v130 = vpack.c.b16 %v106, %v105
  %v131 = vpack.c.b16 %v108, %v107
  %v132 = vpack.c.b16 %v110, %v109
  %v133 = vpack.c.b16 %v112, %v111
  %v134 = vpack.c.b16 %v114, %v113
  %v135 = vpack.c.b16 %v116, %v115
  %v136 = vpack.c.b16 %v118, %v117
  %v137 = vpack.c.b16 %v120, %v119
  %v138 = vpack.c.b16 %v122, %v121
  %v147 = vunpack.c.l.b16 %v47
  %v148 = vunpack.c.l.b16 %v48
  %v149 = vunpack.c.l.b16 %v49
  %v150 = vunpack.c.l.b16 %v50
  %v151 = vunpack.c.l.b16 %v51
  %v152 = vunpack.c.l.b16 %v52
  %v153 = vunpack.c.l.b16 %v53
  %v154 = vunpack.c.l.b16 %v54
  %v155 = vpack.c.b16 %v148, %v147
  %v156 = vpack.c.b16 %v150, %v149
  %v157 = vpack.c.b16 %v152, %v151
  %v158 = vpack.c.b16 %v154, %v153
  %vm163 = vcmask 523264
  %v165 = vsel %vm163, %v123, 0
  %v168 = vsel %vm163, %v124, 0
  %v171 = vsel %vm163, %v125, 0
  %v174 = vsel %vm163, %v126, 0
  %v177 = vsel %vm163, %v127, 0
  %v180 = vsel %vm163, %v128, 0
  %v183 = vsel %vm163, %v129, 0
  %v186 = vsel %vm163, %v130, 0
  %v189 = vsel %vm163, %v131, 0
  %v192 = vsel %vm163, %v132, 0
  %v195 = vsel %vm163, %v133, 0
  %v198 = vsel %vm163, %v134, 0
  %v201 = vsel %vm163, %v135, 0
  %v204 = vsel %vm163, %v136, 0
  %v207 = vsel %vm163, %v137, 0
  %v210 = vsel %vm163, %v138, 0
  %212 = vmatpush.bf16.msra.mxu0 0
  %213 = vmatpush.bf16.msra.mxu0 0
  %214 = vmatpush.bf16.msra.mxu0 0
  %215 = vmatpush.bf16.msra.mxu0 0
  %216 = vmatpush.bf16.msra.mxu0 %v158
  %217 = vmatpush.bf16.msra.mxu0 %v157
  %218 = vmatpush.bf16.msra.mxu0 %v156
  %219 = vmatpush.bf16.msra.mxu0 %v155
  %220 = vmatmul.bf16.gmra.mxu0 %v165
  %v221 = vpop.f32.mrf.mxu0
  %v222 = vadd.f32 %v57, %v221
  %v223 = vpop.f32.mrf.mxu0
  %v224 = vadd.f32 %v57, %v223
  %225 = vmatmul.bf16.gmra.mxu0 %v168
  %v226 = vpop.f32.mrf.mxu0
  %v227 = vadd.f32 %v57, %v226
  %v228 = vpop.f32.mrf.mxu0
  %v229 = vadd.f32 %v57, %v228
  %230 = vmatmul.bf16.gmra.mxu0 %v171
  %v231 = vpop.f32.mrf.mxu0
  %v232 = vadd.f32 %v57, %v231
  %v233 = vpop.f32.mrf.mxu0
  %v234 = vadd.f32 %v57, %v233
  %235 = vmatmul.bf16.gmra.mxu0 %v174
  %v236 = vpop.f32.mrf.mxu0
  %v237 = vadd.f32 %v57, %v236
  %v238 = vpop.f32.mrf.mxu0
  %v239 = vadd.f32 %v57, %v238
  %240 = vmatmul.bf16.gmra.mxu0 %v177
  %v241 = vpop.f32.mrf.mxu0
  %v242 = vadd.f32 %v57, %v241
  %v243 = vpop.f32.mrf.mxu0
  %v244 = vadd.f32 %v57, %v243
  %245 = vmatmul.bf16.gmra.mxu0 %v180
  %v246 = vpop.f32.mrf.mxu0
  %v247 = vadd.f32 %v57, %v246
  %v248 = vpop.f32.mrf.mxu0
  %v249 = vadd.f32 %v57, %v248
  %250 = vmatmul.bf16.gmra.mxu0 %v183
  %v251 = vpop.f32.mrf.mxu0
  %v252 = vadd.f32 %v57, %v251
  %v253 = vpop.f32.mrf.mxu0
  %v254 = vadd.f32 %v57, %v253
  %255 = vmatmul.bf16.gmra.mxu0 %v186
  %v256 = vpop.f32.mrf.mxu0
  %v257 = vadd.f32 %v57, %v256
  %v258 = vpop.f32.mrf.mxu0
  %v259 = vadd.f32 %v57, %v258
  %260 = vmatmul.bf16.gmra.mxu0 %v189
  %v261 = vpop.f32.mrf.mxu0
  %v262 = vadd.f32 %v57, %v261
  %v263 = vpop.f32.mrf.mxu0
  %v264 = vadd.f32 %v57, %v263
  %265 = vmatmul.bf16.gmra.mxu0 %v192
  %v266 = vpop.f32.mrf.mxu0
  %v267 = vadd.f32 %v57, %v266
  %v268 = vpop.f32.mrf.mxu0
  %v269 = vadd.f32 %v57, %v268
  %270 = vmatmul.bf16.gmra.mxu0 %v195
  %v271 = vpop.f32.mrf.mxu0
  %v272 = vadd.f32 %v57, %v271
  %v273 = vpop.f32.mrf.mxu0
  %v274 = vadd.f32 %v57, %v273
  %275 = vmatmul.bf16.gmra.mxu0 %v198
  %v276 = vpop.f32.mrf.mxu0
  %v277 = vadd.f32 %v57, %v276
  %v278 = vpop.f32.mrf.mxu0
  %v279 = vadd.f32 %v57, %v278
  %280 = vmatmul.bf16.gmra.mxu0 %v201
  %v281 = vpop.f32.mrf.mxu0
  %v282 = vadd.f32 %v57, %v281
  %v283 = vpop.f32.mrf.mxu0
  %v284 = vadd.f32 %v57, %v283
  %285 = vmatmul.bf16.gmra.mxu0 %v204
  %v286 = vpop.f32.mrf.mxu0
  %v287 = vadd.f32 %v57, %v286
  %v288 = vpop.f32.mrf.mxu0
  %v289 = vadd.f32 %v57, %v288
  %290 = vmatmul.bf16.gmra.mxu0 %v207
  %v291 = vpop.f32.mrf.mxu0
  %v292 = vadd.f32 %v57, %v291
  %v293 = vpop.f32.mrf.mxu0
  %v294 = vadd.f32 %v57, %v293
  %295 = vmatmul.bf16.gmra.mxu0 %v210
  %v296 = vpop.f32.mrf.mxu0
  %v297 = vadd.f32 %v57, %v296
  %v298 = vpop.f32.mrf.mxu0
  %v299 = vadd.f32 %v57, %v298
  %300 = vdwg.mxu0
  %vm301 = vcmask 23552
  %v302 = vsel %vm301, %v222, -inf
  %303 = vmax.xlane.f32.xlu0 %v302
  %v304 = vpop.xlane.xlu0 %303
  %v305 = vsel %vm301, %v224, -inf
  %306 = vmax.xlane.f32.xlu0 %v305
  %v307 = vpop.xlane.xlu0 %306
  %v308 = vsel %vm301, %v227, -inf
  %309 = vmax.xlane.f32.xlu0 %v308
  %v310 = vpop.xlane.xlu0 %309
  %v311 = vsel %vm301, %v229, -inf
  %312 = vmax.xlane.f32.xlu0 %v311
  %v313 = vpop.xlane.xlu0 %312
  %v314 = vsel %vm301, %v232, -inf
  %315 = vmax.xlane.f32.xlu0 %v314
  %v316 = vpop.xlane.xlu0 %315
  %v317 = vsel %vm301, %v234, -inf
  %318 = vmax.xlane.f32.xlu0 %v317
  %v319 = vpop.xlane.xlu0 %318
  %v320 = vsel %vm301, %v237, -inf
  %321 = vmax.xlane.f32.xlu0 %v320
  %v322 = vpop.xlane.xlu0 %321
  %v323 = vsel %vm301, %v239, -inf
  %324 = vmax.xlane.f32.xlu0 %v323
  %v325 = vpop.xlane.xlu0 %324
  %v326 = vsel %vm301, %v242, -inf
  %327 = vmax.xlane.f32.xlu0 %v326
  %v328 = vpop.xlane.xlu0 %327
  %v329 = vsel %vm301, %v244, -inf
  %330 = vmax.xlane.f32.xlu0 %v329
  %v331 = vpop.xlane.xlu0 %330
  %v332 = vsel %vm301, %v247, -inf
  %333 = vmax.xlane.f32.xlu0 %v332
  %v334 = vpop.xlane.xlu0 %333
  %v335 = vsel %vm301, %v249, -inf
  %336 = vmax.xlane.f32.xlu0 %v335
  %v337 = vpop.xlane.xlu0 %336
  %v338 = vsel %vm301, %v252, -inf
  %339 = vmax.xlane.f32.xlu0 %v338
  %v340 = vpop.xlane.xlu0 %339
  %v341 = vsel %vm301, %v254, -inf
  %342 = vmax.xlane.f32.xlu0 %v341
  %v343 = vpop.xlane.xlu0 %342
  %v344 = vsel %vm301, %v257, -inf
  %345 = vmax.xlane.f32.xlu0 %v344
  %v346 = vpop.xlane.xlu0 %345
  %v347 = vsel %vm301, %v259, -inf
  %348 = vmax.xlane.f32.xlu0 %v347
  %v349 = vpop.xlane.xlu0 %348
  %v350 = vsel %vm301, %v262, -inf
  %351 = vmax.xlane.f32.xlu0 %v350
  %v352 = vpop.xlane.xlu0 %351
  %v353 = vsel %vm301, %v264, -inf
  %354 = vmax.xlane.f32.xlu0 %v353
  %v355 = vpop.xlane.xlu0 %354
  %v356 = vsel %vm301, %v267, -inf
  %357 = vmax.xlane.f32.xlu0 %v356
  %v358 = vpop.xlane.xlu0 %357
  %v359 = vsel %vm301, %v269, -inf
  %360 = vmax.xlane.f32.xlu0 %v359
  %v361 = vpop.xlane.xlu0 %360
  %v362 = vsel %vm301, %v272, -inf
  %363 = vmax.xlane.f32.xlu0 %v362
  %v364 = vpop.xlane.xlu0 %363
  %v365 = vsel %vm301, %v274, -inf
  %366 = vmax.xlane.f32.xlu0 %v365
  %v367 = vpop.xlane.xlu0 %366
  %v368 = vsel %vm301, %v277, -inf
  %369 = vmax.xlane.f32.xlu0 %v368
  %v370 = vpop.xlane.xlu0 %369
  %v371 = vsel %vm301, %v279, -inf
  %372 = vmax.xlane.f32.xlu0 %v371
  %v373 = vpop.xlane.xlu0 %372
  %v374 = vsel %vm301, %v282, -inf
  %375 = vmax.xlane.f32.xlu0 %v374
  %v376 = vpop.xlane.xlu0 %375
  %v377 = vsel %vm301, %v284, -inf
  %378 = vmax.xlane.f32.xlu0 %v377
  %v379 = vpop.xlane.xlu0 %378
  %v380 = vsel %vm301, %v287, -inf
  %381 = vmax.xlane.f32.xlu0 %v380
  %v382 = vpop.xlane.xlu0 %381
  %v383 = vsel %vm301, %v289, -inf
  %384 = vmax.xlane.f32.xlu0 %v383
  %v385 = vpop.xlane.xlu0 %384
  %v386 = vsel %vm301, %v292, -inf
  %387 = vmax.xlane.f32.xlu0 %v386
  %v388 = vpop.xlane.xlu0 %387
  %v389 = vsel %vm301, %v294, -inf
  %390 = vmax.xlane.f32.xlu0 %v389
  %v391 = vpop.xlane.xlu0 %390
  %v392 = vsel %vm301, %v297, -inf
  %393 = vmax.xlane.f32.xlu0 %v392
  %v394 = vpop.xlane.xlu0 %393
  %v395 = vsel %vm301, %v299, -inf
  %396 = vmax.xlane.f32.xlu0 %v395
  %v397 = vpop.xlane.xlu0 %396
  %v398 = vsub.f32 %v222, %v304
  %v399 = vsub.f32 %v224, %v307
  %v400 = vsub.f32 %v227, %v310
  %v401 = vsub.f32 %v229, %v313
  %v402 = vsub.f32 %v232, %v316
  %v403 = vsub.f32 %v234, %v319
  %v404 = vsub.f32 %v237, %v322
  %v405 = vsub.f32 %v239, %v325
  %v406 = vsub.f32 %v242, %v328
  %v407 = vsub.f32 %v244, %v331
  %v408 = vsub.f32 %v247, %v334
  %v409 = vsub.f32 %v249, %v337
  %v410 = vsub.f32 %v252, %v340
  %v411 = vsub.f32 %v254, %v343
  %v412 = vsub.f32 %v257, %v346
  %v413 = vsub.f32 %v259, %v349
  %v414 = vsub.f32 %v262, %v352
  %v415 = vsub.f32 %v264, %v355
  %v416 = vsub.f32 %v267, %v358
  %v417 = vsub.f32 %v269, %v361
  %v418 = vsub.f32 %v272, %v364
  %v419 = vsub.f32 %v274, %v367
  %v420 = vsub.f32 %v277, %v370
  %v421 = vsub.f32 %v279, %v373
  %v422 = vsub.f32 %v282, %v376
  %v423 = vsub.f32 %v284, %v379
  %v424 = vsub.f32 %v287, %v382
  %v425 = vsub.f32 %v289, %v385
  %v426 = vsub.f32 %v292, %v388
  %v427 = vsub.f32 %v294, %v391
  %v428 = vsub.f32 %v297, %v394
  %v429 = vsub.f32 %v299, %v397
  %v430 = vmul.f32 %v398, 1.442695
  %v431 = vpow.pop %v430
  %v432 = vmul.f32 %v399, 1.442695
  %v433 = vpow.pop %v432
  %v434 = vmul.f32 %v400, 1.442695
  %v435 = vpow.pop %v434
  %v436 = vmul.f32 %v401, 1.442695
  %v437 = vpow.pop %v436
  %v438 = vmul.f32 %v402, 1.442695
  %v439 = vpow.pop %v438
  %v440 = vmul.f32 %v403, 1.442695
  %v441 = vpow.pop %v440
  %v442 = vmul.f32 %v404, 1.442695
  %v443 = vpow.pop %v442
  %v444 = vmul.f32 %v405, 1.442695
  %v445 = vpow.pop %v444
  %v446 = vmul.f32 %v406, 1.442695
  %v447 = vpow.pop %v446
  %v448 = vmul.f32 %v407, 1.442695
  %v449 = vpow.pop %v448
  %v450 = vmul.f32 %v408, 1.442695
  %v451 = vpow.pop %v450
  %v452 = vmul.f32 %v409, 1.442695
  %v453 = vpow.pop %v452
  %v454 = vmul.f32 %v410, 1.442695
  %v455 = vpow.pop %v454
  %v456 = vmul.f32 %v411, 1.442695
  %v457 = vpow.pop %v456
  %v458 = vmul.f32 %v412, 1.442695
  %v459 = vpow.pop %v458
  %v460 = vmul.f32 %v413, 1.442695
  %v461 = vpow.pop %v460
  %v462 = vmul.f32 %v414, 1.442695
  %v463 = vpow.pop %v462
  %v464 = vmul.f32 %v415, 1.442695
  %v465 = vpow.pop %v464
  %v466 = vmul.f32 %v416, 1.442695
  %v467 = vpow.pop %v466
  %v468 = vmul.f32 %v417, 1.442695
  %v469 = vpow.pop %v468
  %v470 = vmul.f32 %v418, 1.442695
  %v471 = vpow.pop %v470
  %v472 = vmul.f32 %v419, 1.442695
  %v473 = vpow.pop %v472
  %v474 = vmul.f32 %v420, 1.442695
  %v475 = vpow.pop %v474
  %v476 = vmul.f32 %v421, 1.442695
  %v477 = vpow.pop %v476
  %v478 = vmul.f32 %v422, 1.442695
  %v479 = vpow.pop %v478
  %v480 = vmul.f32 %v423, 1.442695
  %v481 = vpow.pop %v480
  %v482 = vmul.f32 %v424, 1.442695
  %v483 = vpow.pop %v482
  %v484 = vmul.f32 %v425, 1.442695
  %v485 = vpow.pop %v484
  %v486 = vmul.f32 %v426, 1.442695
  %v487 = vpow.pop %v486
  %v488 = vmul.f32 %v427, 1.442695
  %v489 = vpow.pop %v488
  %v490 = vmul.f32 %v428, 1.442695
  %v491 = vpow.pop %v490
  %v492 = vmul.f32 %v429, 1.442695
  %v493 = vpow.pop %v492
  %v494 = vsel %vm301, %v431, 0.0
  %495 = vadd.xlane.f32.xlu0 %v494
  %v496 = vpop.xlane.xlu0 %495
  %v497 = vsel %vm301, %v433, 0.0
  %498 = vadd.xlane.f32.xlu0 %v497
  %v499 = vpop.xlane.xlu0 %498
  %v500 = vsel %vm301, %v435, 0.0
  %501 = vadd.xlane.f32.xlu0 %v500
  %v502 = vpop.xlane.xlu0 %501
  %v503 = vsel %vm301, %v437, 0.0
  %504 = vadd.xlane.f32.xlu0 %v503
  %v505 = vpop.xlane.xlu0 %504
  %v506 = vsel %vm301, %v439, 0.0
  %507 = vadd.xlane.f32.xlu0 %v506
  %v508 = vpop.xlane.xlu0 %507
  %v509 = vsel %vm301, %v441, 0.0
  %510 = vadd.xlane.f32.xlu0 %v509
  %v511 = vpop.xlane.xlu0 %510
  %v512 = vsel %vm301, %v443, 0.0
  %513 = vadd.xlane.f32.xlu0 %v512
  %v514 = vpop.xlane.xlu0 %513
  %v515 = vsel %vm301, %v445, 0.0
  %516 = vadd.xlane.f32.xlu0 %v515
  %v517 = vpop.xlane.xlu0 %516
  %v518 = vsel %vm301, %v447, 0.0
  %519 = vadd.xlane.f32.xlu0 %v518
  %v520 = vpop.xlane.xlu0 %519
  %v521 = vsel %vm301, %v449, 0.0
  %522 = vadd.xlane.f32.xlu0 %v521
  %v523 = vpop.xlane.xlu0 %522
  %v524 = vsel %vm301, %v451, 0.0
  %525 = vadd.xlane.f32.xlu0 %v524
  %v526 = vpop.xlane.xlu0 %525
  %v527 = vsel %vm301, %v453, 0.0
  %528 = vadd.xlane.f32.xlu0 %v527
  %v529 = vpop.xlane.xlu0 %528
  %v530 = vsel %vm301, %v455, 0.0
  %531 = vadd.xlane.f32.xlu0 %v530
  %v532 = vpop.xlane.xlu0 %531
  %v533 = vsel %vm301, %v457, 0.0
  %534 = vadd.xlane.f32.xlu0 %v533
  %v535 = vpop.xlane.xlu0 %534
  %v536 = vsel %vm301, %v459, 0.0
  %537 = vadd.xlane.f32.xlu0 %v536
  %v538 = vpop.xlane.xlu0 %537
  %v539 = vsel %vm301, %v461, 0.0
  %540 = vadd.xlane.f32.xlu0 %v539
  %v541 = vpop.xlane.xlu0 %540
  %v542 = vsel %vm301, %v463, 0.0
  %543 = vadd.xlane.f32.xlu0 %v542
  %v544 = vpop.xlane.xlu0 %543
  %v545 = vsel %vm301, %v465, 0.0
  %546 = vadd.xlane.f32.xlu0 %v545
  %v547 = vpop.xlane.xlu0 %546
  %v548 = vsel %vm301, %v467, 0.0
  %549 = vadd.xlane.f32.xlu0 %v548
  %v550 = vpop.xlane.xlu0 %549
  %v551 = vsel %vm301, %v469, 0.0
  %552 = vadd.xlane.f32.xlu0 %v551
  %v553 = vpop.xlane.xlu0 %552
  %v554 = vsel %vm301, %v471, 0.0
  %555 = vadd.xlane.f32.xlu0 %v554
  %v556 = vpop.xlane.xlu0 %555
  %v557 = vsel %vm301, %v473, 0.0
  %558 = vadd.xlane.f32.xlu0 %v557
  %v559 = vpop.xlane.xlu0 %558
  %v560 = vsel %vm301, %v475, 0.0
  %561 = vadd.xlane.f32.xlu0 %v560
  %v562 = vpop.xlane.xlu0 %561
  %v563 = vsel %vm301, %v477, 0.0
  %564 = vadd.xlane.f32.xlu0 %v563
  %v565 = vpop.xlane.xlu0 %564
  %v566 = vsel %vm301, %v479, 0.0
  %567 = vadd.xlane.f32.xlu0 %v566
  %v568 = vpop.xlane.xlu0 %567
  %v569 = vsel %vm301, %v481, 0.0
  %570 = vadd.xlane.f32.xlu0 %v569
  %v571 = vpop.xlane.xlu0 %570
  %v572 = vsel %vm301, %v483, 0.0
  %573 = vadd.xlane.f32.xlu0 %v572
  %v574 = vpop.xlane.xlu0 %573
  %v575 = vsel %vm301, %v485, 0.0
  %576 = vadd.xlane.f32.xlu0 %v575
  %v577 = vpop.xlane.xlu0 %576
  %v578 = vsel %vm301, %v487, 0.0
  %579 = vadd.xlane.f32.xlu0 %v578
  %v580 = vpop.xlane.xlu0 %579
  %v581 = vsel %vm301, %v489, 0.0
  %582 = vadd.xlane.f32.xlu0 %v581
  %v583 = vpop.xlane.xlu0 %582
  %v584 = vsel %vm301, %v491, 0.0
  %585 = vadd.xlane.f32.xlu0 %v584
  %v586 = vpop.xlane.xlu0 %585
  %v587 = vsel %vm301, %v493, 0.0
  %588 = vadd.xlane.f32.xlu0 %v587
  %v589 = vpop.xlane.xlu0 %588
  %v590 = vrcp.pop %v496
  %v591 = vrcp.pop %v499
  %v592 = vrcp.pop %v502
  %v593 = vrcp.pop %v505
  %v594 = vrcp.pop %v508
  %v595 = vrcp.pop %v511
  %v596 = vrcp.pop %v514
  %v597 = vrcp.pop %v517
  %v598 = vrcp.pop %v520
  %v599 = vrcp.pop %v523
  %v600 = vrcp.pop %v526
  %v601 = vrcp.pop %v529
  %v602 = vrcp.pop %v532
  %v603 = vrcp.pop %v535
  %v604 = vrcp.pop %v538
  %v605 = vrcp.pop %v541
  %v606 = vrcp.pop %v544
  %v607 = vrcp.pop %v547
  %v608 = vrcp.pop %v550
  %v609 = vrcp.pop %v553
  %v610 = vrcp.pop %v556
  %v611 = vrcp.pop %v559
  %v612 = vrcp.pop %v562
  %v613 = vrcp.pop %v565
  %v614 = vrcp.pop %v568
  %v615 = vrcp.pop %v571
  %v616 = vrcp.pop %v574
  %v617 = vrcp.pop %v577
  %v618 = vrcp.pop %v580
  %v619 = vrcp.pop %v583
  %v620 = vrcp.pop %v586
  %v621 = vrcp.pop %v589
  %v622 = vmul.f32 %v431, %v590
  %v623 = vmul.f32 %v433, %v591
  %v624 = vmul.f32 %v435, %v592
  %v625 = vmul.f32 %v437, %v593
  %v626 = vmul.f32 %v439, %v594
  %v627 = vmul.f32 %v441, %v595
  %v628 = vmul.f32 %v443, %v596
  %v629 = vmul.f32 %v445, %v597
  %v630 = vmul.f32 %v447, %v598
  %v631 = vmul.f32 %v449, %v599
  %v632 = vmul.f32 %v451, %v600
  %v633 = vmul.f32 %v453, %v601
  %v634 = vmul.f32 %v455, %v602
  %v635 = vmul.f32 %v457, %v603
  %v636 = vmul.f32 %v459, %v604
  %v637 = vmul.f32 %v461, %v605
  %v638 = vmul.f32 %v463, %v606
  %v639 = vmul.f32 %v465, %v607
  %v640 = vmul.f32 %v467, %v608
  %v641 = vmul.f32 %v469, %v609
  %v642 = vmul.f32 %v471, %v610
  %v643 = vmul.f32 %v473, %v611
  %v644 = vmul.f32 %v475, %v612
  %v645 = vmul.f32 %v477, %v613
  %v646 = vmul.f32 %v479, %v614
  %v647 = vmul.f32 %v481, %v615
  %v648 = vmul.f32 %v483, %v616
  %v649 = vmul.f32 %v485, %v617
  %v650 = vmul.f32 %v487, %v618
  %v651 = vmul.f32 %v489, %v619
  %v652 = vmul.f32 %v491, %v620
  %v653 = vmul.f32 %v493, %v621
  %v654 = vld [vmem:[%s1] sm:$0xf]
  %v655 = vld [vmem:[%s1 + $0x1c] sm:$0xf]
  %v656 = vld [vmem:[%s1 + $0x38] sm:$0xf]
  %v657 = vld [vmem:[%s1 + $0x54] sm:$0xf]
  %v658 = vld [vmem:[%s1 + $0x70] sm:$0xf]
  %v659 = vld [vmem:[%s1 + $0x8c] sm:$0xf]
  %v660 = vld [vmem:[%s1 + $0xa8] sm:$0xf]
  %v661 = vld [vmem:[%s1 + $0xc4] sm:$0xf]
  %v662 = vld [vmem:[%s2] sm:$0x1]
  %v664 = vperm.slane %v662, 0
  %v674 = vunpack.c.l.b16 %v654
  %v675 = vunpack.c.l.b16 %v655
  %v676 = vunpack.c.l.b16 %v656
  %v677 = vunpack.c.l.b16 %v657
  %v678 = vunpack.c.l.b16 %v658
  %v679 = vunpack.c.l.b16 %v659
  %v680 = vunpack.c.l.b16 %v660
  %v681 = vunpack.c.l.b16 %v661
  %v682 = vpack.c.b16 %v675, %v674
  %v683 = vpack.c.b16 %v677, %v676
  %v684 = vpack.c.b16 %v679, %v678
  %v685 = vpack.c.b16 %v681, %v680
  %690 = vmatpush.bf16.msra.mxu0 0
  %691 = vmatpush.bf16.msra.mxu0 0
  %692 = vmatpush.bf16.msra.mxu0 0
  %693 = vmatpush.bf16.msra.mxu0 0
  %694 = vmatpush.bf16.msra.mxu0 %v685
  %695 = vmatpush.bf16.msra.mxu0 %v684
  %696 = vmatpush.bf16.msra.mxu0 %v683
  %697 = vmatpush.bf16.msra.mxu0 %v682
  %698 = vmatmul.bf16.gmra.mxu0 %v165
  %v699 = vpop.f32.mrf.mxu0
  %v700 = vadd.f32 %v664, %v699
  %v701 = vpop.f32.mrf.mxu0
  %v702 = vadd.f32 %v664, %v701
  %703 = vmatmul.bf16.gmra.mxu0 %v168
  %v704 = vpop.f32.mrf.mxu0
  %v705 = vadd.f32 %v664, %v704
  %v706 = vpop.f32.mrf.mxu0
  %v707 = vadd.f32 %v664, %v706
  %708 = vmatmul.bf16.gmra.mxu0 %v171
  %v709 = vpop.f32.mrf.mxu0
  %v710 = vadd.f32 %v664, %v709
  %v711 = vpop.f32.mrf.mxu0
  %v712 = vadd.f32 %v664, %v711
  %713 = vmatmul.bf16.gmra.mxu0 %v174
  %v714 = vpop.f32.mrf.mxu0
  %v715 = vadd.f32 %v664, %v714
  %v716 = vpop.f32.mrf.mxu0
  %v717 = vadd.f32 %v664, %v716
  %718 = vmatmul.bf16.gmra.mxu0 %v177
  %v719 = vpop.f32.mrf.mxu0
  %v720 = vadd.f32 %v664, %v719
  %v721 = vpop.f32.mrf.mxu0
  %v722 = vadd.f32 %v664, %v721
  %723 = vmatmul.bf16.gmra.mxu0 %v180
  %v724 = vpop.f32.mrf.mxu0
  %v725 = vadd.f32 %v664, %v724
  %v726 = vpop.f32.mrf.mxu0
  %v727 = vadd.f32 %v664, %v726
  %728 = vmatmul.bf16.gmra.mxu0 %v183
  %v729 = vpop.f32.mrf.mxu0
  %v730 = vadd.f32 %v664, %v729
  %v731 = vpop.f32.mrf.mxu0
  %v732 = vadd.f32 %v664, %v731
  %733 = vmatmul.bf16.gmra.mxu0 %v186
  %v734 = vpop.f32.mrf.mxu0
  %v735 = vadd.f32 %v664, %v734
  %v736 = vpop.f32.mrf.mxu0
  %v737 = vadd.f32 %v664, %v736
  %738 = vmatmul.bf16.gmra.mxu0 %v189
  %v739 = vpop.f32.mrf.mxu0
  %v740 = vadd.f32 %v664, %v739
  %v741 = vpop.f32.mrf.mxu0
  %v742 = vadd.f32 %v664, %v741
  %743 = vmatmul.bf16.gmra.mxu0 %v192
  %v744 = vpop.f32.mrf.mxu0
  %v745 = vadd.f32 %v664, %v744
  %v746 = vpop.f32.mrf.mxu0
  %v747 = vadd.f32 %v664, %v746
  %748 = vmatmul.bf16.gmra.mxu0 %v195
  %v749 = vpop.f32.mrf.mxu0
  %v750 = vadd.f32 %v664, %v749
  %v751 = vpop.f32.mrf.mxu0
  %v752 = vadd.f32 %v664, %v751
  %753 = vmatmul.bf16.gmra.mxu0 %v198
  %v754 = vpop.f32.mrf.mxu0
  %v755 = vadd.f32 %v664, %v754
  %v756 = vpop.f32.mrf.mxu0
  %v757 = vadd.f32 %v664, %v756
  %758 = vmatmul.bf16.gmra.mxu0 %v201
  %v759 = vpop.f32.mrf.mxu0
  %v760 = vadd.f32 %v664, %v759
  %v761 = vpop.f32.mrf.mxu0
  %v762 = vadd.f32 %v664, %v761
  %763 = vmatmul.bf16.gmra.mxu0 %v204
  %v764 = vpop.f32.mrf.mxu0
  %v765 = vadd.f32 %v664, %v764
  %v766 = vpop.f32.mrf.mxu0
  %v767 = vadd.f32 %v664, %v766
  %768 = vmatmul.bf16.gmra.mxu0 %v207
  %v769 = vpop.f32.mrf.mxu0
  %v770 = vadd.f32 %v664, %v769
  %v771 = vpop.f32.mrf.mxu0
  %v772 = vadd.f32 %v664, %v771
  %773 = vmatmul.bf16.gmra.mxu0 %v210
  %v774 = vpop.f32.mrf.mxu0
  %v775 = vadd.f32 %v664, %v774
  %v776 = vpop.f32.mrf.mxu0
  %v777 = vadd.f32 %v664, %v776
  %778 = vdwg.mxu0
  %v779 = vmax.f32 %v700, 0.0
  %v780 = vmax.f32 %v702, 0.0
  %v781 = vmax.f32 %v705, 0.0
  %v782 = vmax.f32 %v707, 0.0
  %v783 = vmax.f32 %v710, 0.0
  %v784 = vmax.f32 %v712, 0.0
  %v785 = vmax.f32 %v715, 0.0
  %v786 = vmax.f32 %v717, 0.0
  %v787 = vmax.f32 %v720, 0.0
  %v788 = vmax.f32 %v722, 0.0
  %v789 = vmax.f32 %v725, 0.0
  %v790 = vmax.f32 %v727, 0.0
  %v791 = vmax.f32 %v730, 0.0
  %v792 = vmax.f32 %v732, 0.0
  %v793 = vmax.f32 %v735, 0.0
  %v794 = vmax.f32 %v737, 0.0
  %v795 = vmax.f32 %v740, 0.0
  %v796 = vmax.f32 %v742, 0.0
  %v797 = vmax.f32 %v745, 0.0
  %v798 = vmax.f32 %v747, 0.0
  %v799 = vmax.f32 %v750, 0.0
  %v800 = vmax.f32 %v752, 0.0
  %v801 = vmax.f32 %v755, 0.0
  %v802 = vmax.f32 %v757, 0.0
  %v803 = vmax.f32 %v760, 0.0
  %v804 = vmax.f32 %v762, 0.0
  %v805 = vmax.f32 %v765, 0.0
  %v806 = vmax.f32 %v767, 0.0
  %v807 = vmax.f32 %v770, 0.0
  %v808 = vmax.f32 %v772, 0.0
  %v809 = vmax.f32 %v775, 0.0
  %v810 = vmax.f32 %v777, 0.0
  %v811 = vpack.c.bf16 %v780, %v779
  %v812 = vpack.c.bf16 %v782, %v781
  %v813 = vpack.c.bf16 %v784, %v783
  %v814 = vpack.c.bf16 %v786, %v785
  %v815 = vpack.c.bf16 %v788, %v787
  %v816 = vpack.c.bf16 %v790, %v789
  %v817 = vpack.c.bf16 %v792, %v791
  %v818 = vpack.c.bf16 %v794, %v793
  %v819 = vpack.c.bf16 %v796, %v795
  %v820 = vpack.c.bf16 %v798, %v797
  %v821 = vpack.c.bf16 %v800, %v799
  %v822 = vpack.c.bf16 %v802, %v801
  %v823 = vpack.c.bf16 %v804, %v803
  %v824 = vpack.c.bf16 %v806, %v805
  %v825 = vpack.c.bf16 %v808, %v807
  %v826 = vpack.c.bf16 %v810, %v809
  %v827 = vld [vmem:[%s1 + $0x8] sm:$0xf]
  %v828 = vld [vmem:[%s1 + $0x24] sm:$0xf]
  %v829 = vld [vmem:[%s1 + $0x40] sm:$0xf]
  %v830 = vld [vmem:[%s1 + $0x5c] sm:$0xf]
  %v831 = vld [vmem:[%s1 + $0x78] sm:$0xf]
  %v832 = vld [vmem:[%s1 + $0x94] sm:$0xf]
  %v833 = vld [vmem:[%s1 + $0xb0] sm:$0xf]
  %v834 = vld [vmem:[%s1 + $0xcc] sm:$0xf]
  %v835 = vld [vmem:[%s1 + $0xe8] sm:$0xf]
  %v836 = vld [vmem:[%s1 + $0x104] sm:$0xf]
  %v837 = vld [vmem:[%s1 + $0x120] sm:$0xf]
  %v838 = vld [vmem:[%s1 + $0x13c] sm:$0xf]
  %v839 = vld [vmem:[%s2 + $0x2] sm:$0x1]
  %v841 = vperm.slane %v839, 0
  %v855 = vunpack.c.l.b16 %v827
  %v856 = vunpack.c.l.b16 %v828
  %v857 = vunpack.c.l.b16 %v829
  %v858 = vunpack.c.l.b16 %v830
  %v859 = vunpack.c.l.b16 %v831
  %v860 = vunpack.c.l.b16 %v832
  %v861 = vunpack.c.l.b16 %v833
  %v862 = vunpack.c.l.b16 %v834
  %v863 = vunpack.c.l.b16 %v835
  %v864 = vunpack.c.l.b16 %v836
  %v865 = vunpack.c.l.b16 %v837
  %v866 = vunpack.c.l.b16 %v838
  %v867 = vpack.c.b16 %v856, %v855
  %v868 = vpack.c.b16 %v858, %v857
  %v869 = vpack.c.b16 %v860, %v859
  %v870 = vpack.c.b16 %v862, %v861
  %v871 = vpack.c.b16 %v864, %v863
  %v872 = vpack.c.b16 %v866, %v865
  %vm879 = vcmask 785408
  %v881 = vsel %vm879, %v811, 0
  %v884 = vsel %vm879, %v812, 0
  %v887 = vsel %vm879, %v813, 0
  %v890 = vsel %vm879, %v814, 0
  %v893 = vsel %vm879, %v815, 0
  %v896 = vsel %vm879, %v816, 0
  %v899 = vsel %vm879, %v817, 0
  %v902 = vsel %vm879, %v818, 0
  %v905 = vsel %vm879, %v819, 0
  %v908 = vsel %vm879, %v820, 0
  %v911 = vsel %vm879, %v821, 0
  %v914 = vsel %vm879, %v822, 0
  %v917 = vsel %vm879, %v823, 0
  %v920 = vsel %vm879, %v824, 0
  %v923 = vsel %vm879, %v825, 0
  %v926 = vsel %vm879, %v826, 0
  %928 = vmatpush.bf16.msra.mxu0 0
  %929 = vmatpush.bf16.msra.mxu0 0
  %930 = vmatpush.bf16.msra.mxu0 %v872
  %931 = vmatpush.bf16.msra.mxu0 %v871
  %932 = vmatpush.bf16.msra.mxu0 %v870
  %933 = vmatpush.bf16.msra.mxu0 %v869
  %934 = vmatpush.bf16.msra.mxu0 %v868
  %935 = vmatpush.bf16.msra.mxu0 %v867
  %936 = vmatmul.bf16.gmra.mxu0 %v881
  %v937 = vpop.f32.mrf.mxu0
  %v938 = vadd.f32 %v841, %v937
  %v939 = vpop.f32.mrf.mxu0
  %v940 = vadd.f32 %v841, %v939
  %941 = vmatmul.bf16.gmra.mxu0 %v884
  %v942 = vpop.f32.mrf.mxu0
  %v943 = vadd.f32 %v841, %v942
  %v944 = vpop.f32.mrf.mxu0
  %v945 = vadd.f32 %v841, %v944
  %946 = vmatmul.bf16.gmra.mxu0 %v887
  %v947 = vpop.f32.mrf.mxu0
  %v948 = vadd.f32 %v841, %v947
  %v949 = vpop.f32.mrf.mxu0
  %v950 = vadd.f32 %v841, %v949
  %951 = vmatmul.bf16.gmra.mxu0 %v890
  %v952 = vpop.f32.mrf.mxu0
  %v953 = vadd.f32 %v841, %v952
  %v954 = vpop.f32.mrf.mxu0
  %v955 = vadd.f32 %v841, %v954
  %956 = vmatmul.bf16.gmra.mxu0 %v893
  %v957 = vpop.f32.mrf.mxu0
  %v958 = vadd.f32 %v841, %v957
  %v959 = vpop.f32.mrf.mxu0
  %v960 = vadd.f32 %v841, %v959
  %961 = vmatmul.bf16.gmra.mxu0 %v896
  %v962 = vpop.f32.mrf.mxu0
  %v963 = vadd.f32 %v841, %v962
  %v964 = vpop.f32.mrf.mxu0
  %v965 = vadd.f32 %v841, %v964
  %966 = vmatmul.bf16.gmra.mxu0 %v899
  %v967 = vpop.f32.mrf.mxu0
  %v968 = vadd.f32 %v841, %v967
  %v969 = vpop.f32.mrf.mxu0
  %v970 = vadd.f32 %v841, %v969
  %971 = vmatmul.bf16.gmra.mxu0 %v902
  %v972 = vpop.f32.mrf.mxu0
  %v973 = vadd.f32 %v841, %v972
  %v974 = vpop.f32.mrf.mxu0
  %v975 = vadd.f32 %v841, %v974
  %976 = vmatmul.bf16.gmra.mxu0 %v905
  %v977 = vpop.f32.mrf.mxu0
  %v978 = vadd.f32 %v841, %v977
  %v979 = vpop.f32.mrf.mxu0
  %v980 = vadd.f32 %v841, %v979
  %981 = vmatmul.bf16.gmra.mxu0 %v908
  %v982 = vpop.f32.mrf.mxu0
  %v983 = vadd.f32 %v841, %v982
  %v984 = vpop.f32.mrf.mxu0
  %v985 = vadd.f32 %v841, %v984
  %986 = vmatmul.bf16.gmra.mxu0 %v911
  %v987 = vpop.f32.mrf.mxu0
  %v988 = vadd.f32 %v841, %v987
  %v989 = vpop.f32.mrf.mxu0
  %v990 = vadd.f32 %v841, %v989
  %991 = vmatmul.bf16.gmra.mxu0 %v914
  %v992 = vpop.f32.mrf.mxu0
  %v993 = vadd.f32 %v841, %v992
  %v994 = vpop.f32.mrf.mxu0
  %v995 = vadd.f32 %v841, %v994
  %996 = vmatmul.bf16.gmra.mxu0 %v917
  %v997 = vpop.f32.mrf.mxu0
  %v998 = vadd.f32 %v841, %v997
  %v999 = vpop.f32.mrf.mxu0
  %v1000 = vadd.f32 %v841, %v999
  %1001 = vmatmul.bf16.gmra.mxu0 %v920
  %v1002 = vpop.f32.mrf.mxu0
  %v1003 = vadd.f32 %v841, %v1002
  %v1004 = vpop.f32.mrf.mxu0
  %v1005 = vadd.f32 %v841, %v1004
  %1006 = vmatmul.bf16.gmra.mxu0 %v923
  %v1007 = vpop.f32.mrf.mxu0
  %v1008 = vadd.f32 %v841, %v1007
  %v1009 = vpop.f32.mrf.mxu0
  %v1010 = vadd.f32 %v841, %v1009
  %1011 = vmatmul.bf16.gmra.mxu0 %v926
  %v1012 = vpop.f32.mrf.mxu0
  %v1013 = vadd.f32 %v841, %v1012
  %v1014 = vpop.f32.mrf.mxu0
  %v1015 = vadd.f32 %v841, %v1014
  %1016 = vdwg.mxu0
  %v1017 = vmax.f32 %v938, 0.0
  %v1018 = vmax.f32 %v940, 0.0
  %v1019 = vmax.f32 %v943, 0.0
  %v1020 = vmax.f32 %v945, 0.0
  %v1021 = vmax.f32 %v948, 0.0
  %v1022 = vmax.f32 %v950, 0.0
  %v1023 = vmax.f32 %v953, 0.0
  %v1024 = vmax.f32 %v955, 0.0
  %v1025 = vmax.f32 %v958, 0.0
  %v1026 = vmax.f32 %v960, 0.0
  %v1027 = vmax.f32 %v963, 0.0
  %v1028 = vmax.f32 %v965, 0.0
  %v1029 = vmax.f32 %v968, 0.0
  %v1030 = vmax.f32 %v970, 0.0
  %v1031 = vmax.f32 %v973, 0.0
  %v1032 = vmax.f32 %v975, 0.0
  %v1033 = vmax.f32 %v978, 0.0
  %v1034 = vmax.f32 %v980, 0.0
  %v1035 = vmax.f32 %v983, 0.0
  %v1036 = vmax.f32 %v985, 0.0
  %v1037 = vmax.f32 %v988, 0.0
  %v1038 = vmax.f32 %v990, 0.0
  %v1039 = vmax.f32 %v993, 0.0
  %v1040 = vmax.f32 %v995, 0.0
  %v1041 = vmax.f32 %v998, 0.0
  %v1042 = vmax.f32 %v1000, 0.0
  %v1043 = vmax.f32 %v1003, 0.0
  %v1044 = vmax.f32 %v1005, 0.0
  %v1045 = vmax.f32 %v1008, 0.0
  %v1046 = vmax.f32 %v1010, 0.0
  %v1047 = vmax.f32 %v1013, 0.0
  %v1048 = vmax.f32 %v1015, 0.0
  %v1049 = vld [vmem:[%s1 + $0xc] sm:$0x3]
  %v1050 = vunpack.c.l.bf16 %v1049
  %v1052 = vsel %vm301, %v622, 0
  %v1055 = vsel %vm301, %v623, 0
  %v1058 = vsel %vm301, %v624, 0
  %v1061 = vsel %vm301, %v625, 0
  %v1064 = vsel %vm301, %v626, 0
  %v1067 = vsel %vm301, %v627, 0
  %v1070 = vsel %vm301, %v628, 0
  %v1073 = vsel %vm301, %v629, 0
  %v1076 = vsel %vm301, %v630, 0
  %v1079 = vsel %vm301, %v631, 0
  %v1082 = vsel %vm301, %v632, 0
  %v1085 = vsel %vm301, %v633, 0
  %v1088 = vsel %vm301, %v634, 0
  %v1091 = vsel %vm301, %v635, 0
  %v1094 = vsel %vm301, %v636, 0
  %v1097 = vsel %vm301, %v637, 0
  %v1100 = vsel %vm301, %v638, 0
  %v1103 = vsel %vm301, %v639, 0
  %v1106 = vsel %vm301, %v640, 0
  %v1109 = vsel %vm301, %v641, 0
  %v1112 = vsel %vm301, %v642, 0
  %v1115 = vsel %vm301, %v643, 0
  %v1118 = vsel %vm301, %v644, 0
  %v1121 = vsel %vm301, %v645, 0
  %v1124 = vsel %vm301, %v646, 0
  %v1127 = vsel %vm301, %v647, 0
  %v1130 = vsel %vm301, %v648, 0
  %v1133 = vsel %vm301, %v649, 0
  %v1136 = vsel %vm301, %v650, 0
  %v1139 = vsel %vm301, %v651, 0
  %v1142 = vsel %vm301, %v652, 0
  %v1145 = vsel %vm301, %v653, 0
  %vm1147 = vcmask 1042432
  %v1149 = vsel %vm1147, %v1050, 0
  %1151 = vmatpush.msra.mxu0 0.0
  %1152 = vmatpush.msra.mxu0 0.0
  %1153 = vmatpush.msra.mxu0 0.0
  %1154 = vmatpush.msra.mxu0 0.0
  %1155 = vmatpush.msra.mxu0 0.0
  %1156 = vmatpush.msra.mxu0 0.0
  %1157 = vmatpush.msra.mxu0 0.0
  %1158 = vmatpush.msra.mxu0 0.0
  %1159 = vmatpush.msra.mxu0 0.0
  %1160 = vmatpush.msra.mxu0 0.0
  %1161 = vmatpush.msra.mxu0 0.0
  %1162 = vmatpush.msra.mxu0 0.0
  %1163 = vmatpush.msra.mxu0 0.0
  %1164 = vmatpush.msra.mxu0 0.0
  %1165 = vmatpush.msra.mxu0 0.0
  %1166 = vmatpush.msra.mxu0 %v1149
  %1167 = vmatmul.f32.gmra.mxu0 %v1052
  %v1168 = vpop.f32.mrf.mxu0
  %v1169 = vadd.f32 0.0, %v1168
  %1170 = vmatmul.f32.gmra.mxu0 %v1055
  %v1171 = vpop.f32.mrf.mxu0
  %v1172 = vadd.f32 0.0, %v1171
  %1173 = vmatmul.f32.gmra.mxu0 %v1058
  %v1174 = vpop.f32.mrf.mxu0
  %v1175 = vadd.f32 0.0, %v1174
  %1176 = vmatmul.f32.gmra.mxu0 %v1061
  %v1177 = vpop.f32.mrf.mxu0
  %v1178 = vadd.f32 0.0, %v1177
  %1179 = vmatmul.f32.gmra.mxu0 %v1064
  %v1180 = vpop.f32.mrf.mxu0
  %v1181 = vadd.f32 0.0, %v1180
  %1182 = vmatmul.f32.gmra.mxu0 %v1067
  %v1183 = vpop.f32.mrf.mxu0
  %v1184 = vadd.f32 0.0, %v1183
  %1185 = vmatmul.f32.gmra.mxu0 %v1070
  %v1186 = vpop.f32.mrf.mxu0
  %v1187 = vadd.f32 0.0, %v1186
  %1188 = vmatmul.f32.gmra.mxu0 %v1073
  %v1189 = vpop.f32.mrf.mxu0
  %v1190 = vadd.f32 0.0, %v1189
  %1191 = vmatmul.f32.gmra.mxu0 %v1076
  %v1192 = vpop.f32.mrf.mxu0
  %v1193 = vadd.f32 0.0, %v1192
  %1194 = vmatmul.f32.gmra.mxu0 %v1079
  %v1195 = vpop.f32.mrf.mxu0
  %v1196 = vadd.f32 0.0, %v1195
  %1197 = vmatmul.f32.gmra.mxu0 %v1082
  %v1198 = vpop.f32.mrf.mxu0
  %v1199 = vadd.f32 0.0, %v1198
  %1200 = vmatmul.f32.gmra.mxu0 %v1085
  %v1201 = vpop.f32.mrf.mxu0
  %v1202 = vadd.f32 0.0, %v1201
  %1203 = vmatmul.f32.gmra.mxu0 %v1088
  %v1204 = vpop.f32.mrf.mxu0
  %v1205 = vadd.f32 0.0, %v1204
  %1206 = vmatmul.f32.gmra.mxu0 %v1091
  %v1207 = vpop.f32.mrf.mxu0
  %v1208 = vadd.f32 0.0, %v1207
  %1209 = vmatmul.f32.gmra.mxu0 %v1094
  %v1210 = vpop.f32.mrf.mxu0
  %v1211 = vadd.f32 0.0, %v1210
  %1212 = vmatmul.f32.gmra.mxu0 %v1097
  %v1213 = vpop.f32.mrf.mxu0
  %v1214 = vadd.f32 0.0, %v1213
  %1215 = vmatmul.f32.gmra.mxu0 %v1100
  %v1216 = vpop.f32.mrf.mxu0
  %v1217 = vadd.f32 0.0, %v1216
  %1218 = vmatmul.f32.gmra.mxu0 %v1103
  %v1219 = vpop.f32.mrf.mxu0
  %v1220 = vadd.f32 0.0, %v1219
  %1221 = vmatmul.f32.gmra.mxu0 %v1106
  %v1222 = vpop.f32.mrf.mxu0
  %v1223 = vadd.f32 0.0, %v1222
  %1224 = vmatmul.f32.gmra.mxu0 %v1109
  %v1225 = vpop.f32.mrf.mxu0
  %v1226 = vadd.f32 0.0, %v1225
  %1227 = vmatmul.f32.gmra.mxu0 %v1112
  %v1228 = vpop.f32.mrf.mxu0
  %v1229 = vadd.f32 0.0, %v1228
  %1230 = vmatmul.f32.gmra.mxu0 %v1115
  %v1231 = vpop.f32.mrf.mxu0
  %v1232 = vadd.f32 0.0, %v1231
  %1233 = vmatmul.f32.gmra.mxu0 %v1118
  %v1234 = vpop.f32.mrf.mxu0
  %v1235 = vadd.f32 0.0, %v1234
  %1236 = vmatmul.f32.gmra.mxu0 %v1121
  %v1237 = vpop.f32.mrf.mxu0
  %v1238 = vadd.f32 0.0, %v1237
  %1239 = vmatmul.f32.gmra.mxu0 %v1124
  %v1240 = vpop.f32.mrf.mxu0
  %v1241 = vadd.f32 0.0, %v1240
  %1242 = vmatmul.f32.gmra.mxu0 %v1127
  %v1243 = vpop.f32.mrf.mxu0
  %v1244 = vadd.f32 0.0, %v1243
  %1245 = vmatmul.f32.gmra.mxu0 %v1130
  %v1246 = vpop.f32.mrf.mxu0
  %v1247 = vadd.f32 0.0, %v1246
  %1248 = vmatmul.f32.gmra.mxu0 %v1133
  %v1249 = vpop.f32.mrf.mxu0
  %v1250 = vadd.f32 0.0, %v1249
  %1251 = vmatmul.f32.gmra.mxu0 %v1136
  %v1252 = vpop.f32.mrf.mxu0
  %v1253 = vadd.f32 0.0, %v1252
  %1254 = vmatmul.f32.gmra.mxu0 %v1139
  %v1255 = vpop.f32.mrf.mxu0
  %v1256 = vadd.f32 0.0, %v1255
  %1257 = vmatmul.f32.gmra.mxu0 %v1142
  %v1258 = vpop.f32.mrf.mxu0
  %v1259 = vadd.f32 0.0, %v1258
  %1260 = vmatmul.f32.gmra.mxu0 %v1145
  %v1261 = vpop.f32.mrf.mxu0
  %v1262 = vadd.f32 0.0, %v1261
  %1263 = vdwg.mxu0
  %v1264 = vmul.f32 %v1169, %v1017
  %v1265 = vmul.f32 %v1172, %v1018
  %v1266 = vmul.f32 %v1175, %v1019
  %v1267 = vmul.f32 %v1178, %v1020
  %v1268 = vmul.f32 %v1181, %v1021
  %v1269 = vmul.f32 %v1184, %v1022
  %v1270 = vmul.f32 %v1187, %v1023
  %v1271 = vmul.f32 %v1190, %v1024
  %v1272 = vmul.f32 %v1193, %v1025
  %v1273 = vmul.f32 %v1196, %v1026
  %v1274 = vmul.f32 %v1199, %v1027
  %v1275 = vmul.f32 %v1202, %v1028
  %v1276 = vmul.f32 %v1205, %v1029
  %v1277 = vmul.f32 %v1208, %v1030
  %v1278 = vmul.f32 %v1211, %v1031
  %v1279 = vmul.f32 %v1214, %v1032
  %v1280 = vmul.f32 %v1217, %v1033
  %v1281 = vmul.f32 %v1220, %v1034
  %v1282 = vmul.f32 %v1223, %v1035
  %v1283 = vmul.f32 %v1226, %v1036
  %v1284 = vmul.f32 %v1229, %v1037
  %v1285 = vmul.f32 %v1232, %v1038
  %v1286 = vmul.f32 %v1235, %v1039
  %v1287 = vmul.f32 %v1238, %v1040
  %v1288 = vmul.f32 %v1241, %v1041
  %v1289 = vmul.f32 %v1244, %v1042
  %v1290 = vmul.f32 %v1247, %v1043
  %v1291 = vmul.f32 %v1250, %v1044
  %v1292 = vmul.f32 %v1253, %v1045
  %v1293 = vmul.f32 %v1256, %v1046
  %v1294 = vmul.f32 %v1259, %v1047
  %v1295 = vmul.f32 %v1262, %v1048
  %v1296 = vpack.c.bf16 %v1265, %v1264
  %v1297 = vpack.c.bf16 %v1267, %v1266
  %v1298 = vpack.c.bf16 %v1269, %v1268
  %v1299 = vpack.c.bf16 %v1271, %v1270
  %v1300 = vpack.c.bf16 %v1273, %v1272
  %v1301 = vpack.c.bf16 %v1275, %v1274
  %v1302 = vpack.c.bf16 %v1277, %v1276
  %v1303 = vpack.c.bf16 %v1279, %v1278
  %v1304 = vpack.c.bf16 %v1281, %v1280
  %v1305 = vpack.c.bf16 %v1283, %v1282
  %v1306 = vpack.c.bf16 %v1285, %v1284
  %v1307 = vpack.c.bf16 %v1287, %v1286
  %v1308 = vpack.c.bf16 %v1289, %v1288
  %v1309 = vpack.c.bf16 %v1291, %v1290
  %v1310 = vpack.c.bf16 %v1293, %v1292
  %v1311 = vpack.c.bf16 %v1295, %v1294
  %v1312 = vld [vmem:[%s1 + $0x10] sm:$0xf]
  %v1313 = vld [vmem:[%s1 + $0x2c] sm:$0xf]
  %v1314 = vld [vmem:[%s1 + $0x48] sm:$0xf]
  %v1315 = vld [vmem:[%s1 + $0x64] sm:$0xf]
  %v1316 = vld [vmem:[%s1 + $0x80] sm:$0xf]
  %v1317 = vld [vmem:[%s1 + $0x9c] sm:$0xf]
  %v1318 = vld [vmem:[%s2 + $0x4] sm:$0x1]
  %v1320 = vperm.slane %v1318, 0
  %v1328 = vunpack.c.l.b16 %v1312
  %v1329 = vunpack.c.l.b16 %v1313
  %v1330 = vunpack.c.l.b16 %v1314
  %v1331 = vunpack.c.l.b16 %v1315
  %v1332 = vunpack.c.l.b16 %v1316
  %v1333 = vunpack.c.l.b16 %v1317
  %v1334 = vpack.c.b16 %v1329, %v1328
  %v1335 = vpack.c.b16 %v1331, %v1330
  %v1336 = vpack.c.b16 %v1333, %v1332
  %vm1340 = vcmask 392192
  %v1342 = vsel %vm1340, %v1296, 0
  %v1345 = vsel %vm1340, %v1297, 0
  %v1348 = vsel %vm1340, %v1298, 0
  %v1351 = vsel %vm1340, %v1299, 0
  %v1354 = vsel %vm1340, %v1300, 0
  %v1357 = vsel %vm1340, %v1301, 0
  %v1360 = vsel %vm1340, %v1302, 0
  %v1363 = vsel %vm1340, %v1303, 0
  %v1366 = vsel %vm1340, %v1304, 0
  %v1369 = vsel %vm1340, %v1305, 0
  %v1372 = vsel %vm1340, %v1306, 0
  %v1375 = vsel %vm1340, %v1307, 0
  %v1378 = vsel %vm1340, %v1308, 0
  %v1381 = vsel %vm1340, %v1309, 0
  %v1384 = vsel %vm1340, %v1310, 0
  %v1387 = vsel %vm1340, %v1311, 0
  %1389 = vmatpush.bf16.msra.mxu0 0
  %1390 = vmatpush.bf16.msra.mxu0 0
  %1391 = vmatpush.bf16.msra.mxu0 0
  %1392 = vmatpush.bf16.msra.mxu0 0
  %1393 = vmatpush.bf16.msra.mxu0 0
  %1394 = vmatpush.bf16.msra.mxu0 %v1336
  %1395 = vmatpush.bf16.msra.mxu0 %v1335
  %1396 = vmatpush.bf16.msra.mxu0 %v1334
  %1397 = vmatmul.bf16.gmra.mxu0 %v1342
  %v1398 = vpop.f32.mrf.mxu0
  %v1399 = vadd.f32 %v1320, %v1398
  %v1400 = vpop.f32.mrf.mxu0
  %v1401 = vadd.f32 %v1320, %v1400
  %1402 = vmatmul.bf16.gmra.mxu0 %v1345
  %v1403 = vpop.f32.mrf.mxu0
  %v1404 = vadd.f32 %v1320, %v1403
  %v1405 = vpop.f32.mrf.mxu0
  %v1406 = vadd.f32 %v1320, %v1405
  %1407 = vmatmul.bf16.gmra.mxu0 %v1348
  %v1408 = vpop.f32.mrf.mxu0
  %v1409 = vadd.f32 %v1320, %v1408
  %v1410 = vpop.f32.mrf.mxu0
  %v1411 = vadd.f32 %v1320, %v1410
  %1412 = vmatmul.bf16.gmra.mxu0 %v1351
  %v1413 = vpop.f32.mrf.mxu0
  %v1414 = vadd.f32 %v1320, %v1413
  %v1415 = vpop.f32.mrf.mxu0
  %v1416 = vadd.f32 %v1320, %v1415
  %1417 = vmatmul.bf16.gmra.mxu0 %v1354
  %v1418 = vpop.f32.mrf.mxu0
  %v1419 = vadd.f32 %v1320, %v1418
  %v1420 = vpop.f32.mrf.mxu0
  %v1421 = vadd.f32 %v1320, %v1420
  %1422 = vmatmul.bf16.gmra.mxu0 %v1357
  %v1423 = vpop.f32.mrf.mxu0
  %v1424 = vadd.f32 %v1320, %v1423
  %v1425 = vpop.f32.mrf.mxu0
  %v1426 = vadd.f32 %v1320, %v1425
  %1427 = vmatmul.bf16.gmra.mxu0 %v1360
  %v1428 = vpop.f32.mrf.mxu0
  %v1429 = vadd.f32 %v1320, %v1428
  %v1430 = vpop.f32.mrf.mxu0
  %v1431 = vadd.f32 %v1320, %v1430
  %1432 = vmatmul.bf16.gmra.mxu0 %v1363
  %v1433 = vpop.f32.mrf.mxu0
  %v1434 = vadd.f32 %v1320, %v1433
  %v1435 = vpop.f32.mrf.mxu0
  %v1436 = vadd.f32 %v1320, %v1435
  %1437 = vmatmul.bf16.gmra.mxu0 %v1366
  %v1438 = vpop.f32.mrf.mxu0
  %v1439 = vadd.f32 %v1320, %v1438
  %v1440 = vpop.f32.mrf.mxu0
  %v1441 = vadd.f32 %v1320, %v1440
  %1442 = vmatmul.bf16.gmra.mxu0 %v1369
  %v1443 = vpop.f32.mrf.mxu0
  %v1444 = vadd.f32 %v1320, %v1443
  %v1445 = vpop.f32.mrf.mxu0
  %v1446 = vadd.f32 %v1320, %v1445
  %1447 = vmatmul.bf16.gmra.mxu0 %v1372
  %v1448 = vpop.f32.mrf.mxu0
  %v1449 = vadd.f32 %v1320, %v1448
  %v1450 = vpop.f32.mrf.mxu0
  %v1451 = vadd.f32 %v1320, %v1450
  %1452 = vmatmul.bf16.gmra.mxu0 %v1375
  %v1453 = vpop.f32.mrf.mxu0
  %v1454 = vadd.f32 %v1320, %v1453
  %v1455 = vpop.f32.mrf.mxu0
  %v1456 = vadd.f32 %v1320, %v1455
  %1457 = vmatmul.bf16.gmra.mxu0 %v1378
  %v1458 = vpop.f32.mrf.mxu0
  %v1459 = vadd.f32 %v1320, %v1458
  %v1460 = vpop.f32.mrf.mxu0
  %v1461 = vadd.f32 %v1320, %v1460
  %1462 = vmatmul.bf16.gmra.mxu0 %v1381
  %v1463 = vpop.f32.mrf.mxu0
  %v1464 = vadd.f32 %v1320, %v1463
  %v1465 = vpop.f32.mrf.mxu0
  %v1466 = vadd.f32 %v1320, %v1465
  %1467 = vmatmul.bf16.gmra.mxu0 %v1384
  %v1468 = vpop.f32.mrf.mxu0
  %v1469 = vadd.f32 %v1320, %v1468
  %v1470 = vpop.f32.mrf.mxu0
  %v1471 = vadd.f32 %v1320, %v1470
  %1472 = vmatmul.bf16.gmra.mxu0 %v1387
  %v1473 = vpop.f32.mrf.mxu0
  %v1474 = vadd.f32 %v1320, %v1473
  %v1475 = vpop.f32.mrf.mxu0
  %v1476 = vadd.f32 %v1320, %v1475
  %1477 = vdwg.mxu0
  %v1478 = vmax.f32 %v1399, 0.0
  %v1479 = vmax.f32 %v1401, 0.0
  %v1480 = vmax.f32 %v1404, 0.0
  %v1481 = vmax.f32 %v1406, 0.0
  %v1482 = vmax.f32 %v1409, 0.0
  %v1483 = vmax.f32 %v1411, 0.0
  %v1484 = vmax.f32 %v1414, 0.0
  %v1485 = vmax.f32 %v1416, 0.0
  %v1486 = vmax.f32 %v1419, 0.0
  %v1487 = vmax.f32 %v1421, 0.0
  %v1488 = vmax.f32 %v1424, 0.0
  %v1489 = vmax.f32 %v1426, 0.0
  %v1490 = vmax.f32 %v1429, 0.0
  %v1491 = vmax.f32 %v1431, 0.0
  %v1492 = vmax.f32 %v1434, 0.0
  %v1493 = vmax.f32 %v1436, 0.0
  %v1494 = vmax.f32 %v1439, 0.0
  %v1495 = vmax.f32 %v1441, 0.0
  %v1496 = vmax.f32 %v1444, 0.0
  %v1497 = vmax.f32 %v1446, 0.0
  %v1498 = vmax.f32 %v1449, 0.0
  %v1499 = vmax.f32 %v1451, 0.0
  %v1500 = vmax.f32 %v1454, 0.0
  %v1501 = vmax.f32 %v1456, 0.0
  %v1502 = vmax.f32 %v1459, 0.0
  %v1503 = vmax.f32 %v1461, 0.0
  %v1504 = vmax.f32 %v1464, 0.0
  %v1505 = vmax.f32 %v1466, 0.0
  %v1506 = vmax.f32 %v1469, 0.0
  %v1507 = vmax.f32 %v1471, 0.0
  %v1508 = vmax.f32 %v1474, 0.0
  %v1509 = vmax.f32 %v1476, 0.0
  %v1510 = vpack.c.bf16 %v1479, %v1478
  %v1511 = vpack.c.bf16 %v1481, %v1480
  %v1512 = vpack.c.bf16 %v1483, %v1482
  %v1513 = vpack.c.bf16 %v1485, %v1484
  %v1514 = vpack.c.bf16 %v1487, %v1486
  %v1515 = vpack.c.bf16 %v1489, %v1488
  %v1516 = vpack.c.bf16 %v1491, %v1490
  %v1517 = vpack.c.bf16 %v1493, %v1492
  %v1518 = vpack.c.bf16 %v1495, %v1494
  %v1519 = vpack.c.bf16 %v1497, %v1496
  %v1520 = vpack.c.bf16 %v1499, %v1498
  %v1521 = vpack.c.bf16 %v1501, %v1500
  %v1522 = vpack.c.bf16 %v1503, %v1502
  %v1523 = vpack.c.bf16 %v1505, %v1504
  %v1524 = vpack.c.bf16 %v1507, %v1506
  %v1525 = vpack.c.bf16 %v1509, %v1508
  %v1526 = vld [vmem:[%s1 + $0x14] sm:$0xf]
  %v1527 = vld [vmem:[%s1 + $0x30] sm:$0xf]
  %v1528 = vld [vmem:[%s1 + $0x4c] sm:$0xf]
  %v1529 = vld [vmem:[%s1 + $0x68] sm:$0xf]
  %v1530 = vld [vmem:[%s2 + $0x5] sm:$0x1]
  %v1532 = vperm.slane %v1530, 0
  %v1538 = vunpack.c.l.b16 %v1526
  %v1539 = vunpack.c.l.b16 %v1527
  %v1540 = vunpack.c.l.b16 %v1528
  %v1541 = vunpack.c.l.b16 %v1529
  %v1542 = vpack.c.b16 %v1539, %v1538
  %v1543 = vpack.c.b16 %v1541, %v1540
  %vm1546 = vcmask 261120
  %v1548 = vsel %vm1546, %v1510, 0
  %v1551 = vsel %vm1546, %v1511, 0
  %v1554 = vsel %vm1546, %v1512, 0
  %v1557 = vsel %vm1546, %v1513, 0
  %v1560 = vsel %vm1546, %v1514, 0
  %v1563 = vsel %vm1546, %v1515, 0
  %v1566 = vsel %vm1546, %v1516, 0
  %v1569 = vsel %vm1546, %v1517, 0
  %v1572 = vsel %vm1546, %v1518, 0
  %v1575 = vsel %vm1546, %v1519, 0
  %v1578 = vsel %vm1546, %v1520, 0
  %v1581 = vsel %vm1546, %v1521, 0
  %v1584 = vsel %vm1546, %v1522, 0
  %v1587 = vsel %vm1546, %v1523, 0
  %v1590 = vsel %vm1546, %v1524, 0
  %v1593 = vsel %vm1546, %v1525, 0
  %1595 = vmatpush.bf16.msra.mxu0 0
  %1596 = vmatpush.bf16.msra.mxu0 0
  %1597 = vmatpush.bf16.msra.mxu0 0
  %1598 = vmatpush.bf16.msra.mxu0 0
  %1599 = vmatpush.bf16.msra.mxu0 0
  %1600 = vmatpush.bf16.msra.mxu0 0
  %1601 = vmatpush.bf16.msra.mxu0 %v1543
  %1602 = vmatpush.bf16.msra.mxu0 %v1542
  %1603 = vmatmul.bf16.gmra.mxu0 %v1548
  %v1604 = vpop.f32.mrf.mxu0
  %v1605 = vadd.f32 %v1532, %v1604
  %v1606 = vpop.f32.mrf.mxu0
  %v1607 = vadd.f32 %v1532, %v1606
  %1608 = vmatmul.bf16.gmra.mxu0 %v1551
  %v1609 = vpop.f32.mrf.mxu0
  %v1610 = vadd.f32 %v1532, %v1609
  %v1611 = vpop.f32.mrf.mxu0
  %v1612 = vadd.f32 %v1532, %v1611
  %1613 = vmatmul.bf16.gmra.mxu0 %v1554
  %v1614 = vpop.f32.mrf.mxu0
  %v1615 = vadd.f32 %v1532, %v1614
  %v1616 = vpop.f32.mrf.mxu0
  %v1617 = vadd.f32 %v1532, %v1616
  %1618 = vmatmul.bf16.gmra.mxu0 %v1557
  %v1619 = vpop.f32.mrf.mxu0
  %v1620 = vadd.f32 %v1532, %v1619
  %v1621 = vpop.f32.mrf.mxu0
  %v1622 = vadd.f32 %v1532, %v1621
  %1623 = vmatmul.bf16.gmra.mxu0 %v1560
  %v1624 = vpop.f32.mrf.mxu0
  %v1625 = vadd.f32 %v1532, %v1624
  %v1626 = vpop.f32.mrf.mxu0
  %v1627 = vadd.f32 %v1532, %v1626
  %1628 = vmatmul.bf16.gmra.mxu0 %v1563
  %v1629 = vpop.f32.mrf.mxu0
  %v1630 = vadd.f32 %v1532, %v1629
  %v1631 = vpop.f32.mrf.mxu0
  %v1632 = vadd.f32 %v1532, %v1631
  %1633 = vmatmul.bf16.gmra.mxu0 %v1566
  %v1634 = vpop.f32.mrf.mxu0
  %v1635 = vadd.f32 %v1532, %v1634
  %v1636 = vpop.f32.mrf.mxu0
  %v1637 = vadd.f32 %v1532, %v1636
  %1638 = vmatmul.bf16.gmra.mxu0 %v1569
  %v1639 = vpop.f32.mrf.mxu0
  %v1640 = vadd.f32 %v1532, %v1639
  %v1641 = vpop.f32.mrf.mxu0
  %v1642 = vadd.f32 %v1532, %v1641
  %1643 = vmatmul.bf16.gmra.mxu0 %v1572
  %v1644 = vpop.f32.mrf.mxu0
  %v1645 = vadd.f32 %v1532, %v1644
  %v1646 = vpop.f32.mrf.mxu0
  %v1647 = vadd.f32 %v1532, %v1646
  %1648 = vmatmul.bf16.gmra.mxu0 %v1575
  %v1649 = vpop.f32.mrf.mxu0
  %v1650 = vadd.f32 %v1532, %v1649
  %v1651 = vpop.f32.mrf.mxu0
  %v1652 = vadd.f32 %v1532, %v1651
  %1653 = vmatmul.bf16.gmra.mxu0 %v1578
  %v1654 = vpop.f32.mrf.mxu0
  %v1655 = vadd.f32 %v1532, %v1654
  %v1656 = vpop.f32.mrf.mxu0
  %v1657 = vadd.f32 %v1532, %v1656
  %1658 = vmatmul.bf16.gmra.mxu0 %v1581
  %v1659 = vpop.f32.mrf.mxu0
  %v1660 = vadd.f32 %v1532, %v1659
  %v1661 = vpop.f32.mrf.mxu0
  %v1662 = vadd.f32 %v1532, %v1661
  %1663 = vmatmul.bf16.gmra.mxu0 %v1584
  %v1664 = vpop.f32.mrf.mxu0
  %v1665 = vadd.f32 %v1532, %v1664
  %v1666 = vpop.f32.mrf.mxu0
  %v1667 = vadd.f32 %v1532, %v1666
  %1668 = vmatmul.bf16.gmra.mxu0 %v1587
  %v1669 = vpop.f32.mrf.mxu0
  %v1670 = vadd.f32 %v1532, %v1669
  %v1671 = vpop.f32.mrf.mxu0
  %v1672 = vadd.f32 %v1532, %v1671
  %1673 = vmatmul.bf16.gmra.mxu0 %v1590
  %v1674 = vpop.f32.mrf.mxu0
  %v1675 = vadd.f32 %v1532, %v1674
  %v1676 = vpop.f32.mrf.mxu0
  %v1677 = vadd.f32 %v1532, %v1676
  %1678 = vmatmul.bf16.gmra.mxu0 %v1593
  %v1679 = vpop.f32.mrf.mxu0
  %v1680 = vadd.f32 %v1532, %v1679
  %v1681 = vpop.f32.mrf.mxu0
  %v1682 = vadd.f32 %v1532, %v1681
  %1683 = vdwg.mxu0
  %v1684 = vmax.f32 %v1605, 0.0
  %v1685 = vmax.f32 %v1607, 0.0
  %v1686 = vmax.f32 %v1610, 0.0
  %v1687 = vmax.f32 %v1612, 0.0
  %v1688 = vmax.f32 %v1615, 0.0
  %v1689 = vmax.f32 %v1617, 0.0
  %v1690 = vmax.f32 %v1620, 0.0
  %v1691 = vmax.f32 %v1622, 0.0
  %v1692 = vmax.f32 %v1625, 0.0
  %v1693 = vmax.f32 %v1627, 0.0
  %v1694 = vmax.f32 %v1630, 0.0
  %v1695 = vmax.f32 %v1632, 0.0
  %v1696 = vmax.f32 %v1635, 0.0
  %v1697 = vmax.f32 %v1637, 0.0
  %v1698 = vmax.f32 %v1640, 0.0
  %v1699 = vmax.f32 %v1642, 0.0
  %v1700 = vmax.f32 %v1645, 0.0
  %v1701 = vmax.f32 %v1647, 0.0
  %v1702 = vmax.f32 %v1650, 0.0
  %v1703 = vmax.f32 %v1652, 0.0
  %v1704 = vmax.f32 %v1655, 0.0
  %v1705 = vmax.f32 %v1657, 0.0
  %v1706 = vmax.f32 %v1660, 0.0
  %v1707 = vmax.f32 %v1662, 0.0
  %v1708 = vmax.f32 %v1665, 0.0
  %v1709 = vmax.f32 %v1667, 0.0
  %v1710 = vmax.f32 %v1670, 0.0
  %v1711 = vmax.f32 %v1672, 0.0
  %v1712 = vmax.f32 %v1675, 0.0
  %v1713 = vmax.f32 %v1677, 0.0
  %v1714 = vmax.f32 %v1680, 0.0
  %v1715 = vmax.f32 %v1682, 0.0
  %v1716 = vpack.c.bf16 %v1685, %v1684
  %v1717 = vpack.c.bf16 %v1687, %v1686
  %v1718 = vpack.c.bf16 %v1689, %v1688
  %v1719 = vpack.c.bf16 %v1691, %v1690
  %v1720 = vpack.c.bf16 %v1693, %v1692
  %v1721 = vpack.c.bf16 %v1695, %v1694
  %v1722 = vpack.c.bf16 %v1697, %v1696
  %v1723 = vpack.c.bf16 %v1699, %v1698
  %v1724 = vpack.c.bf16 %v1701, %v1700
  %v1725 = vpack.c.bf16 %v1703, %v1702
  %v1726 = vpack.c.bf16 %v1705, %v1704
  %v1727 = vpack.c.bf16 %v1707, %v1706
  %v1728 = vpack.c.bf16 %v1709, %v1708
  %v1729 = vpack.c.bf16 %v1711, %v1710
  %v1730 = vpack.c.bf16 %v1713, %v1712
  %v1731 = vpack.c.bf16 %v1715, %v1714
  %v1732 = vld [vmem:[%s1 + $0x18] sm:$0xf]
  %v1733 = vld [vmem:[%s1 + $0x34] sm:$0xf]
  %v1734 = vld [vmem:[%s2 + $0x6] sm:$0x1]
  %v1736 = vperm.slane %v1734, 0
  %v1740 = vunpack.c.l.b16 %v1732
  %v1741 = vunpack.c.l.b16 %v1733
  %v1742 = vpack.c.b16 %v1741, %v1740
  %vm1744 = vcmask 130048
  %v1746 = vsel %vm1744, %v1716, 0
  %v1749 = vsel %vm1744, %v1717, 0
  %v1752 = vsel %vm1744, %v1718, 0
  %v1755 = vsel %vm1744, %v1719, 0
  %v1758 = vsel %vm1744, %v1720, 0
  %v1761 = vsel %vm1744, %v1721, 0
  %v1764 = vsel %vm1744, %v1722, 0
  %v1767 = vsel %vm1744, %v1723, 0
  %v1770 = vsel %vm1744, %v1724, 0
  %v1773 = vsel %vm1744, %v1725, 0
  %v1776 = vsel %vm1744, %v1726, 0
  %v1779 = vsel %vm1744, %v1727, 0
  %v1782 = vsel %vm1744, %v1728, 0
  %v1785 = vsel %vm1744, %v1729, 0
  %v1788 = vsel %vm1744, %v1730, 0
  %v1791 = vsel %vm1744, %v1731, 0
  %1793 = vmatpush.bf16.msra.mxu0 0
  %1794 = vmatpush.bf16.msra.mxu0 0
  %1795 = vmatpush.bf16.msra.mxu0 0
  %1796 = vmatpush.bf16.msra.mxu0 0
  %1797 = vmatpush.bf16.msra.mxu0 0
  %1798 = vmatpush.bf16.msra.mxu0 0
  %1799 = vmatpush.bf16.msra.mxu0 0
  %1800 = vmatpush.bf16.msra.mxu0 %v1742
  %1801 = vmatmul.bf16.gmra.mxu0 %v1746
  %v1802 = vpop.f32.mrf.mxu0
  %v1803 = vadd.f32 %v1736, %v1802
  %v1804 = vpop.f32.mrf.mxu0
  %v1805 = vadd.f32 %v1736, %v1804
  %1806 = vmatmul.bf16.gmra.mxu0 %v1749
  %v1807 = vpop.f32.mrf.mxu0
  %v1808 = vadd.f32 %v1736, %v1807
  %v1809 = vpop.f32.mrf.mxu0
  %v1810 = vadd.f32 %v1736, %v1809
  %1811 = vmatmul.bf16.gmra.mxu0 %v1752
  %v1812 = vpop.f32.mrf.mxu0
  %v1813 = vadd.f32 %v1736, %v1812
  %v1814 = vpop.f32.mrf.mxu0
  %v1815 = vadd.f32 %v1736, %v1814
  %1816 = vmatmul.bf16.gmra.mxu0 %v1755
  %v1817 = vpop.f32.mrf.mxu0
  %v1818 = vadd.f32 %v1736, %v1817
  %v1819 = vpop.f32.mrf.mxu0
  %v1820 = vadd.f32 %v1736, %v1819
  %1821 = vmatmul.bf16.gmra.mxu0 %v1758
  %v1822 = vpop.f32.mrf.mxu0
  %v1823 = vadd.f32 %v1736, %v1822
  %v1824 = vpop.f32.mrf.mxu0
  %v1825 = vadd.f32 %v1736, %v1824
  %1826 = vmatmul.bf16.gmra.mxu0 %v1761
  %v1827 = vpop.f32.mrf.mxu0
  %v1828 = vadd.f32 %v1736, %v1827
  %v1829 = vpop.f32.mrf.mxu0
  %v1830 = vadd.f32 %v1736, %v1829
  %1831 = vmatmul.bf16.gmra.mxu0 %v1764
  %v1832 = vpop.f32.mrf.mxu0
  %v1833 = vadd.f32 %v1736, %v1832
  %v1834 = vpop.f32.mrf.mxu0
  %v1835 = vadd.f32 %v1736, %v1834
  %1836 = vmatmul.bf16.gmra.mxu0 %v1767
  %v1837 = vpop.f32.mrf.mxu0
  %v1838 = vadd.f32 %v1736, %v1837
  %v1839 = vpop.f32.mrf.mxu0
  %v1840 = vadd.f32 %v1736, %v1839
  %1841 = vmatmul.bf16.gmra.mxu0 %v1770
  %v1842 = vpop.f32.mrf.mxu0
  %v1843 = vadd.f32 %v1736, %v1842
  %v1844 = vpop.f32.mrf.mxu0
  %v1845 = vadd.f32 %v1736, %v1844
  %1846 = vmatmul.bf16.gmra.mxu0 %v1773
  %v1847 = vpop.f32.mrf.mxu0
  %v1848 = vadd.f32 %v1736, %v1847
  %v1849 = vpop.f32.mrf.mxu0
  %v1850 = vadd.f32 %v1736, %v1849
  %1851 = vmatmul.bf16.gmra.mxu0 %v1776
  %v1852 = vpop.f32.mrf.mxu0
  %v1853 = vadd.f32 %v1736, %v1852
  %v1854 = vpop.f32.mrf.mxu0
  %v1855 = vadd.f32 %v1736, %v1854
  %1856 = vmatmul.bf16.gmra.mxu0 %v1779
  %v1857 = vpop.f32.mrf.mxu0
  %v1858 = vadd.f32 %v1736, %v1857
  %v1859 = vpop.f32.mrf.mxu0
  %v1860 = vadd.f32 %v1736, %v1859
  %1861 = vmatmul.bf16.gmra.mxu0 %v1782
  %v1862 = vpop.f32.mrf.mxu0
  %v1863 = vadd.f32 %v1736, %v1862
  %v1864 = vpop.f32.mrf.mxu0
  %v1865 = vadd.f32 %v1736, %v1864
  %1866 = vmatmul.bf16.gmra.mxu0 %v1785
  %v1867 = vpop.f32.mrf.mxu0
  %v1868 = vadd.f32 %v1736, %v1867
  %v1869 = vpop.f32.mrf.mxu0
  %v1870 = vadd.f32 %v1736, %v1869
  %1871 = vmatmul.bf16.gmra.mxu0 %v1788
  %v1872 = vpop.f32.mrf.mxu0
  %v1873 = vadd.f32 %v1736, %v1872
  %v1874 = vpop.f32.mrf.mxu0
  %v1875 = vadd.f32 %v1736, %v1874
  %1876 = vmatmul.bf16.gmra.mxu0 %v1791
  %v1877 = vpop.f32.mrf.mxu0
  %v1878 = vadd.f32 %v1736, %v1877
  %v1879 = vpop.f32.mrf.mxu0
  %v1880 = vadd.f32 %v1736, %v1879
  %1881 = vdwg.mxu0
  %v1882 = vsub.f32 0.0, %v1803
  %v1883 = vsub.f32 0.0, %v1805
  %v1884 = vsub.f32 0.0, %v1808
  %v1885 = vsub.f32 0.0, %v1810
  %v1886 = vsub.f32 0.0, %v1813
  %v1887 = vsub.f32 0.0, %v1815
  %v1888 = vsub.f32 0.0, %v1818
  %v1889 = vsub.f32 0.0, %v1820
  %v1890 = vsub.f32 0.0, %v1823
  %v1891 = vsub.f32 0.0, %v1825
  %v1892 = vsub.f32 0.0, %v1828
  %v1893 = vsub.f32 0.0, %v1830
  %v1894 = vsub.f32 0.0, %v1833
  %v1895 = vsub.f32 0.0, %v1835
  %v1896 = vsub.f32 0.0, %v1838
  %v1897 = vsub.f32 0.0, %v1840
  %v1898 = vsub.f32 0.0, %v1843
  %v1899 = vsub.f32 0.0, %v1845
  %v1900 = vsub.f32 0.0, %v1848
  %v1901 = vsub.f32 0.0, %v1850
  %v1902 = vsub.f32 0.0, %v1853
  %v1903 = vsub.f32 0.0, %v1855
  %v1904 = vsub.f32 0.0, %v1858
  %v1905 = vsub.f32 0.0, %v1860
  %v1906 = vsub.f32 0.0, %v1863
  %v1907 = vsub.f32 0.0, %v1865
  %v1908 = vsub.f32 0.0, %v1868
  %v1909 = vsub.f32 0.0, %v1870
  %v1910 = vsub.f32 0.0, %v1873
  %v1911 = vsub.f32 0.0, %v1875
  %v1912 = vsub.f32 0.0, %v1878
  %v1913 = vsub.f32 0.0, %v1880
  %v1914 = vmul.f32 %v1882, 1.442695
  %v1915 = vpow.pop %v1914
  %v1916 = vmul.f32 %v1883, 1.442695
  %v1917 = vpow.pop %v1916
  %v1918 = vmul.f32 %v1884, 1.442695
  %v1919 = vpow.pop %v1918
  %v1920 = vmul.f32 %v1885, 1.442695
  %v1921 = vpow.pop %v1920
  %v1922 = vmul.f32 %v1886, 1.442695
  %v1923 = vpow.pop %v1922
  %v1924 = vmul.f32 %v1887, 1.442695
  %v1925 = vpow.pop %v1924
  %v1926 = vmul.f32 %v1888, 1.442695
  %v1927 = vpow.pop %v1926
  %v1928 = vmul.f32 %v1889, 1.442695
  %v1929 = vpow.pop %v1928
  %v1930 = vmul.f32 %v1890, 1.442695
  %v1931 = vpow.pop %v1930
  %v1932 = vmul.f32 %v1891, 1.442695
  %v1933 = vpow.pop %v1932
  %v1934 = vmul.f32 %v1892, 1.442695
  %v1935 = vpow.pop %v1934
  %v1936 = vmul.f32 %v1893, 1.442695
  %v1937 = vpow.pop %v1936
  %v1938 = vmul.f32 %v1894, 1.442695
  %v1939 = vpow.pop %v1938
  %v1940 = vmul.f32 %v1895, 1.442695
  %v1941 = vpow.pop %v1940
  %v1942 = vmul.f32 %v1896, 1.442695
  %v1943 = vpow.pop %v1942
  %v1944 = vmul.f32 %v1897, 1.442695
  %v1945 = vpow.pop %v1944
  %v1946 = vmul.f32 %v1898, 1.442695
  %v1947 = vpow.pop %v1946
  %v1948 = vmul.f32 %v1899, 1.442695
  %v1949 = vpow.pop %v1948
  %v1950 = vmul.f32 %v1900, 1.442695
  %v1951 = vpow.pop %v1950
  %v1952 = vmul.f32 %v1901, 1.442695
  %v1953 = vpow.pop %v1952
  %v1954 = vmul.f32 %v1902, 1.442695
  %v1955 = vpow.pop %v1954
  %v1956 = vmul.f32 %v1903, 1.442695
  %v1957 = vpow.pop %v1956
  %v1958 = vmul.f32 %v1904, 1.442695
  %v1959 = vpow.pop %v1958
  %v1960 = vmul.f32 %v1905, 1.442695
  %v1961 = vpow.pop %v1960
  %v1962 = vmul.f32 %v1906, 1.442695
  %v1963 = vpow.pop %v1962
  %v1964 = vmul.f32 %v1907, 1.442695
  %v1965 = vpow.pop %v1964
  %v1966 = vmul.f32 %v1908, 1.442695
  %v1967 = vpow.pop %v1966
  %v1968 = vmul.f32 %v1909, 1.442695
  %v1969 = vpow.pop %v1968
  %v1970 = vmul.f32 %v1910, 1.442695
  %v1971 = vpow.pop %v1970
  %v1972 = vmul.f32 %v1911, 1.442695
  %v1973 = vpow.pop %v1972
  %v1974 = vmul.f32 %v1912, 1.442695
  %v1975 = vpow.pop %v1974
  %v1976 = vmul.f32 %v1913, 1.442695
  %v1977 = vpow.pop %v1976
  %v1978 = vadd.f32 %v1915, 1.0
  %v1979 = vadd.f32 %v1917, 1.0
  %v1980 = vadd.f32 %v1919, 1.0
  %v1981 = vadd.f32 %v1921, 1.0
  %v1982 = vadd.f32 %v1923, 1.0
  %v1983 = vadd.f32 %v1925, 1.0
  %v1984 = vadd.f32 %v1927, 1.0
  %v1985 = vadd.f32 %v1929, 1.0
  %v1986 = vadd.f32 %v1931, 1.0
  %v1987 = vadd.f32 %v1933, 1.0
  %v1988 = vadd.f32 %v1935, 1.0
  %v1989 = vadd.f32 %v1937, 1.0
  %v1990 = vadd.f32 %v1939, 1.0
  %v1991 = vadd.f32 %v1941, 1.0
  %v1992 = vadd.f32 %v1943, 1.0
  %v1993 = vadd.f32 %v1945, 1.0
  %v1994 = vadd.f32 %v1947, 1.0
  %v1995 = vadd.f32 %v1949, 1.0
  %v1996 = vadd.f32 %v1951, 1.0
  %v1997 = vadd.f32 %v1953, 1.0
  %v1998 = vadd.f32 %v1955, 1.0
  %v1999 = vadd.f32 %v1957, 1.0
  %v2000 = vadd.f32 %v1959, 1.0
  %v2001 = vadd.f32 %v1961, 1.0
  %v2002 = vadd.f32 %v1963, 1.0
  %v2003 = vadd.f32 %v1965, 1.0
  %v2004 = vadd.f32 %v1967, 1.0
  %v2005 = vadd.f32 %v1969, 1.0
  %v2006 = vadd.f32 %v1971, 1.0
  %v2007 = vadd.f32 %v1973, 1.0
  %v2008 = vadd.f32 %v1975, 1.0
  %v2009 = vadd.f32 %v1977, 1.0
  %v2010 = vrcp.pop %v1978
  %v2011 = vmul.f32 %v1978, %v2010
  %v2012 = vsub.f32 1.0, %v2011
  %v2013 = vmul.f32 %v2010, %v2012
  %v2014 = vadd.f32 %v2010, %v2013
  %vm2015 = vweird.f32 %v1978
  %vm2016 = vweird.f32 %v2010
  %vm2017 = vmor %vm2015, %vm2016
  %v2018 = vsel %vm2017, %v2010, %v2014
  %v2019 = vand.u32 2147483647, %v1978
  %vm2020 = vcmp.eq.f32.partialorder %v2019, 8.507059e+37
  %v2021 = vand.u32 %v1978, 2147483648
  %v2022 = vor.u32 1.1754944e-38, %v2021
  %v2023 = vsel %vm2020, %v2022, %v2018
  %v2024 = vmul.f32 1.0, %v2023
  %v2025 = vrcp.pop %v1979
  %v2026 = vmul.f32 %v1979, %v2025
  %v2027 = vsub.f32 1.0, %v2026
  %v2028 = vmul.f32 %v2025, %v2027
  %v2029 = vadd.f32 %v2025, %v2028
  %vm2030 = vweird.f32 %v1979
  %vm2031 = vweird.f32 %v2025
  %vm2032 = vmor %vm2030, %vm2031
  %v2033 = vsel %vm2032, %v2025, %v2029
  %v2034 = vand.u32 2147483647, %v1979
  %vm2035 = vcmp.eq.f32.partialorder %v2034, 8.507059e+37
  %v2036 = vand.u32 %v1979, 2147483648
  %v2037 = vor.u32 1.1754944e-38, %v2036
  %v2038 = vsel %vm2035, %v2037, %v2033
  %v2039 = vmul.f32 1.0, %v2038
  %v2040 = vrcp.pop %v1980
  %v2041 = vmul.f32 %v1980, %v2040
  %v2042 = vsub.f32 1.0, %v2041
  %v2043 = vmul.f32 %v2040, %v2042
  %v2044 = vadd.f32 %v2040, %v2043
  %vm2045 = vweird.f32 %v1980
  %vm2046 = vweird.f32 %v2040
  %vm2047 = vmor %vm2045, %vm2046
  %v2048 = vsel %vm2047, %v2040, %v2044
  %v2049 = vand.u32 2147483647, %v1980
  %vm2050 = vcmp.eq.f32.partialorder %v2049, 8.507059e+37
  %v2051 = vand.u32 %v1980, 2147483648
  %v2052 = vor.u32 1.1754944e-38, %v2051
  %v2053 = vsel %vm2050, %v2052, %v2048
  %v2054 = vmul.f32 1.0, %v2053
  %v2055 = vrcp.pop %v1981
  %v2056 = vmul.f32 %v1981, %v2055
  %v2057 = vsub.f32 1.0, %v2056
  %v2058 = vmul.f32 %v2055, %v2057
  %v2059 = vadd.f32 %v2055, %v2058
  %vm2060 = vweird.f32 %v1981
  %vm2061 = vweird.f32 %v2055
  %vm2062 = vmor %vm2060, %vm2061
  %v2063 = vsel %vm2062, %v2055, %v2059
  %v2064 = vand.u32 2147483647, %v1981
  %vm2065 = vcmp.eq.f32.partialorder %v2064, 8.507059e+37
  %v2066 = vand.u32 %v1981, 2147483648
  %v2067 = vor.u32 1.1754944e-38, %v2066
  %v2068 = vsel %vm2065, %v2067, %v2063
  %v2069 = vmul.f32 1.0, %v2068
  %v2070 = vrcp.pop %v1982
  %v2071 = vmul.f32 %v1982, %v2070
  %v2072 = vsub.f32 1.0, %v2071
  %v2073 = vmul.f32 %v2070, %v2072
  %v2074 = vadd.f32 %v2070, %v2073
  %vm2075 = vweird.f32 %v1982
  %vm2076 = vweird.f32 %v2070
  %vm2077 = vmor %vm2075, %vm2076
  %v2078 = vsel %vm2077, %v2070, %v2074
  %v2079 = vand.u32 2147483647, %v1982
  %vm2080 = vcmp.eq.f32.partialorder %v2079, 8.507059e+37
  %v2081 = vand.u32 %v1982, 2147483648
  %v2082 = vor.u32 1.1754944e-38, %v2081
  %v2083 = vsel %vm2080, %v2082, %v2078
  %v2084 = vmul.f32 1.0, %v2083
  %v2085 = vrcp.pop %v1983
  %v2086 = vmul.f32 %v1983, %v2085
  %v2087 = vsub.f32 1.0, %v2086
  %v2088 = vmul.f32 %v2085, %v2087
  %v2089 = vadd.f32 %v2085, %v2088
  %vm2090 = vweird.f32 %v1983
  %vm2091 = vweird.f32 %v2085
  %vm2092 = vmor %vm2090, %vm2091
  %v2093 = vsel %vm2092, %v2085, %v2089
  %v2094 = vand.u32 2147483647, %v1983
  %vm2095 = vcmp.eq.f32.partialorder %v2094, 8.507059e+37
  %v2096 = vand.u32 %v1983, 2147483648
  %v2097 = vor.u32 1.1754944e-38, %v2096
  %v2098 = vsel %vm2095, %v2097, %v2093
  %v2099 = vmul.f32 1.0, %v2098
  %v2100 = vrcp.pop %v1984
  %v2101 = vmul.f32 %v1984, %v2100
  %v2102 = vsub.f32 1.0, %v2101
  %v2103 = vmul.f32 %v2100, %v2102
  %v2104 = vadd.f32 %v2100, %v2103
  %vm2105 = vweird.f32 %v1984
  %vm2106 = vweird.f32 %v2100
  %vm2107 = vmor %vm2105, %vm2106
  %v2108 = vsel %vm2107, %v2100, %v2104
  %v2109 = vand.u32 2147483647, %v1984
  %vm2110 = vcmp.eq.f32.partialorder %v2109, 8.507059e+37
  %v2111 = vand.u32 %v1984, 2147483648
  %v2112 = vor.u32 1.1754944e-38, %v2111
  %v2113 = vsel %vm2110, %v2112, %v2108
  %v2114 = vmul.f32 1.0, %v2113
  %v2115 = vrcp.pop %v1985
  %v2116 = vmul.f32 %v1985, %v2115
  %v2117 = vsub.f32 1.0, %v2116
  %v2118 = vmul.f32 %v2115, %v2117
  %v2119 = vadd.f32 %v2115, %v2118
  %vm2120 = vweird.f32 %v1985
  %vm2121 = vweird.f32 %v2115
  %vm2122 = vmor %vm2120, %vm2121
  %v2123 = vsel %vm2122, %v2115, %v2119
  %v2124 = vand.u32 2147483647, %v1985
  %vm2125 = vcmp.eq.f32.partialorder %v2124, 8.507059e+37
  %v2126 = vand.u32 %v1985, 2147483648
  %v2127 = vor.u32 1.1754944e-38, %v2126
  %v2128 = vsel %vm2125, %v2127, %v2123
  %v2129 = vmul.f32 1.0, %v2128
  %v2130 = vrcp.pop %v1986
  %v2131 = vmul.f32 %v1986, %v2130
  %v2132 = vsub.f32 1.0, %v2131
  %v2133 = vmul.f32 %v2130, %v2132
  %v2134 = vadd.f32 %v2130, %v2133
  %vm2135 = vweird.f32 %v1986
  %vm2136 = vweird.f32 %v2130
  %vm2137 = vmor %vm2135, %vm2136
  %v2138 = vsel %vm2137, %v2130, %v2134
  %v2139 = vand.u32 2147483647, %v1986
  %vm2140 = vcmp.eq.f32.partialorder %v2139, 8.507059e+37
  %v2141 = vand.u32 %v1986, 2147483648
  %v2142 = vor.u32 1.1754944e-38, %v2141
  %v2143 = vsel %vm2140, %v2142, %v2138
  %v2144 = vmul.f32 1.0, %v2143
  %v2145 = vrcp.pop %v1987
  %v2146 = vmul.f32 %v1987, %v2145
  %v2147 = vsub.f32 1.0, %v2146
  %v2148 = vmul.f32 %v2145, %v2147
  %v2149 = vadd.f32 %v2145, %v2148
  %vm2150 = vweird.f32 %v1987
  %vm2151 = vweird.f32 %v2145
  %vm2152 = vmor %vm2150, %vm2151
  %v2153 = vsel %vm2152, %v2145, %v2149
  %v2154 = vand.u32 2147483647, %v1987
  %vm2155 = vcmp.eq.f32.partialorder %v2154, 8.507059e+37
  %v2156 = vand.u32 %v1987, 2147483648
  %v2157 = vor.u32 1.1754944e-38, %v2156
  %v2158 = vsel %vm2155, %v2157, %v2153
  %v2159 = vmul.f32 1.0, %v2158
  %v2160 = vrcp.pop %v1988
  %v2161 = vmul.f32 %v1988, %v2160
  %v2162 = vsub.f32 1.0, %v2161
  %v2163 = vmul.f32 %v2160, %v2162
  %v2164 = vadd.f32 %v2160, %v2163
  %vm2165 = vweird.f32 %v1988
  %vm2166 = vweird.f32 %v2160
  %vm2167 = vmor %vm2165, %vm2166
  %v2168 = vsel %vm2167, %v2160, %v2164
  %v2169 = vand.u32 2147483647, %v1988
  %vm2170 = vcmp.eq.f32.partialorder %v2169, 8.507059e+37
  %v2171 = vand.u32 %v1988, 2147483648
  %v2172 = vor.u32 1.1754944e-38, %v2171
  %v2173 = vsel %vm2170, %v2172, %v2168
  %v2174 = vmul.f32 1.0, %v2173
  %v2175 = vrcp.pop %v1989
  %v2176 = vmul.f32 %v1989, %v2175
  %v2177 = vsub.f32 1.0, %v2176
  %v2178 = vmul.f32 %v2175, %v2177
  %v2179 = vadd.f32 %v2175, %v2178
  %vm2180 = vweird.f32 %v1989
  %vm2181 = vweird.f32 %v2175
  %vm2182 = vmor %vm2180, %vm2181
  %v2183 = vsel %vm2182, %v2175, %v2179
  %v2184 = vand.u32 2147483647, %v1989
  %vm2185 = vcmp.eq.f32.partialorder %v2184, 8.507059e+37
  %v2186 = vand.u32 %v1989, 2147483648
  %v2187 = vor.u32 1.1754944e-38, %v2186
  %v2188 = vsel %vm2185, %v2187, %v2183
  %v2189 = vmul.f32 1.0, %v2188
  %v2190 = vrcp.pop %v1990
  %v2191 = vmul.f32 %v1990, %v2190
  %v2192 = vsub.f32 1.0, %v2191
  %v2193 = vmul.f32 %v2190, %v2192
  %v2194 = vadd.f32 %v2190, %v2193
  %vm2195 = vweird.f32 %v1990
  %vm2196 = vweird.f32 %v2190
  %vm2197 = vmor %vm2195, %vm2196
  %v2198 = vsel %vm2197, %v2190, %v2194
  %v2199 = vand.u32 2147483647, %v1990
  %vm2200 = vcmp.eq.f32.partialorder %v2199, 8.507059e+37
  %v2201 = vand.u32 %v1990, 2147483648
  %v2202 = vor.u32 1.1754944e-38, %v2201
  %v2203 = vsel %vm2200, %v2202, %v2198
  %v2204 = vmul.f32 1.0, %v2203
  %v2205 = vrcp.pop %v1991
  %v2206 = vmul.f32 %v1991, %v2205
  %v2207 = vsub.f32 1.0, %v2206
  %v2208 = vmul.f32 %v2205, %v2207
  %v2209 = vadd.f32 %v2205, %v2208
  %vm2210 = vweird.f32 %v1991
  %vm2211 = vweird.f32 %v2205
  %vm2212 = vmor %vm2210, %vm2211
  %v2213 = vsel %vm2212, %v2205, %v2209
  %v2214 = vand.u32 2147483647, %v1991
  %vm2215 = vcmp.eq.f32.partialorder %v2214, 8.507059e+37
  %v2216 = vand.u32 %v1991, 2147483648
  %v2217 = vor.u32 1.1754944e-38, %v2216
  %v2218 = vsel %vm2215, %v2217, %v2213
  %v2219 = vmul.f32 1.0, %v2218
  %v2220 = vrcp.pop %v1992
  %v2221 = vmul.f32 %v1992, %v2220
  %v2222 = vsub.f32 1.0, %v2221
  %v2223 = vmul.f32 %v2220, %v2222
  %v2224 = vadd.f32 %v2220, %v2223
  %vm2225 = vweird.f32 %v1992
  %vm2226 = vweird.f32 %v2220
  %vm2227 = vmor %vm2225, %vm2226
  %v2228 = vsel %vm2227, %v2220, %v2224
  %v2229 = vand.u32 2147483647, %v1992
  %vm2230 = vcmp.eq.f32.partialorder %v2229, 8.507059e+37
  %v2231 = vand.u32 %v1992, 2147483648
  %v2232 = vor.u32 1.1754944e-38, %v2231
  %v2233 = vsel %vm2230, %v2232, %v2228
  %v2234 = vmul.f32 1.0, %v2233
  %v2235 = vrcp.pop %v1993
  %v2236 = vmul.f32 %v1993, %v2235
  %v2237 = vsub.f32 1.0, %v2236
  %v2238 = vmul.f32 %v2235, %v2237
  %v2239 = vadd.f32 %v2235, %v2238
  %vm2240 = vweird.f32 %v1993
  %vm2241 = vweird.f32 %v2235
  %vm2242 = vmor %vm2240, %vm2241
  %v2243 = vsel %vm2242, %v2235, %v2239
  %v2244 = vand.u32 2147483647, %v1993
  %vm2245 = vcmp.eq.f32.partialorder %v2244, 8.507059e+37
  %v2246 = vand.u32 %v1993, 2147483648
  %v2247 = vor.u32 1.1754944e-38, %v2246
  %v2248 = vsel %vm2245, %v2247, %v2243
  %v2249 = vmul.f32 1.0, %v2248
  %v2250 = vrcp.pop %v1994
  %v2251 = vmul.f32 %v1994, %v2250
  %v2252 = vsub.f32 1.0, %v2251
  %v2253 = vmul.f32 %v2250, %v2252
  %v2254 = vadd.f32 %v2250, %v2253
  %vm2255 = vweird.f32 %v1994
  %vm2256 = vweird.f32 %v2250
  %vm2257 = vmor %vm2255, %vm2256
  %v2258 = vsel %vm2257, %v2250, %v2254
  %v2259 = vand.u32 2147483647, %v1994
  %vm2260 = vcmp.eq.f32.partialorder %v2259, 8.507059e+37
  %v2261 = vand.u32 %v1994, 2147483648
  %v2262 = vor.u32 1.1754944e-38, %v2261
  %v2263 = vsel %vm2260, %v2262, %v2258
  %v2264 = vmul.f32 1.0, %v2263
  %v2265 = vrcp.pop %v1995
  %v2266 = vmul.f32 %v1995, %v2265
  %v2267 = vsub.f32 1.0, %v2266
  %v2268 = vmul.f32 %v2265, %v2267
  %v2269 = vadd.f32 %v2265, %v2268
  %vm2270 = vweird.f32 %v1995
  %vm2271 = vweird.f32 %v2265
  %vm2272 = vmor %vm2270, %vm2271
  %v2273 = vsel %vm2272, %v2265, %v2269
  %v2274 = vand.u32 2147483647, %v1995
  %vm2275 = vcmp.eq.f32.partialorder %v2274, 8.507059e+37
  %v2276 = vand.u32 %v1995, 2147483648
  %v2277 = vor.u32 1.1754944e-38, %v2276
  %v2278 = vsel %vm2275, %v2277, %v2273
  %v2279 = vmul.f32 1.0, %v2278
  %v2280 = vrcp.pop %v1996
  %v2281 = vmul.f32 %v1996, %v2280
  %v2282 = vsub.f32 1.0, %v2281
  %v2283 = vmul.f32 %v2280, %v2282
  %v2284 = vadd.f32 %v2280, %v2283
  %vm2285 = vweird.f32 %v1996
  %vm2286 = vweird.f32 %v2280
  %vm2287 = vmor %vm2285, %vm2286
  %v2288 = vsel %vm2287, %v2280, %v2284
  %v2289 = vand.u32 2147483647, %v1996
  %vm2290 = vcmp.eq.f32.partialorder %v2289, 8.507059e+37
  %v2291 = vand.u32 %v1996, 2147483648
  %v2292 = vor.u32 1.1754944e-38, %v2291
  %v2293 = vsel %vm2290, %v2292, %v2288
  %v2294 = vmul.f32 1.0, %v2293
  %v2295 = vrcp.pop %v1997
  %v2296 = vmul.f32 %v1997, %v2295
  %v2297 = vsub.f32 1.0, %v2296
  %v2298 = vmul.f32 %v2295, %v2297
  %v2299 = vadd.f32 %v2295, %v2298
  %vm2300 = vweird.f32 %v1997
  %vm2301 = vweird.f32 %v2295
  %vm2302 = vmor %vm2300, %vm2301
  %v2303 = vsel %vm2302, %v2295, %v2299
  %v2304 = vand.u32 2147483647, %v1997
  %vm2305 = vcmp.eq.f32.partialorder %v2304, 8.507059e+37
  %v2306 = vand.u32 %v1997, 2147483648
  %v2307 = vor.u32 1.1754944e-38, %v2306
  %v2308 = vsel %vm2305, %v2307, %v2303
  %v2309 = vmul.f32 1.0, %v2308
  %v2310 = vrcp.pop %v1998
  %v2311 = vmul.f32 %v1998, %v2310
  %v2312 = vsub.f32 1.0, %v2311
  %v2313 = vmul.f32 %v2310, %v2312
  %v2314 = vadd.f32 %v2310, %v2313
  %vm2315 = vweird.f32 %v1998
  %vm2316 = vweird.f32 %v2310
  %vm2317 = vmor %vm2315, %vm2316
  %v2318 = vsel %vm2317, %v2310, %v2314
  %v2319 = vand.u32 2147483647, %v1998
  %vm2320 = vcmp.eq.f32.partialorder %v2319, 8.507059e+37
  %v2321 = vand.u32 %v1998, 2147483648
  %v2322 = vor.u32 1.1754944e-38, %v2321
  %v2323 = vsel %vm2320, %v2322, %v2318
  %v2324 = vmul.f32 1.0, %v2323
  %v2325 = vrcp.pop %v1999
  %v2326 = vmul.f32 %v1999, %v2325
  %v2327 = vsub.f32 1.0, %v2326
  %v2328 = vmul.f32 %v2325, %v2327
  %v2329 = vadd.f32 %v2325, %v2328
  %vm2330 = vweird.f32 %v1999
  %vm2331 = vweird.f32 %v2325
  %vm2332 = vmor %vm2330, %vm2331
  %v2333 = vsel %vm2332, %v2325, %v2329
  %v2334 = vand.u32 2147483647, %v1999
  %vm2335 = vcmp.eq.f32.partialorder %v2334, 8.507059e+37
  %v2336 = vand.u32 %v1999, 2147483648
  %v2337 = vor.u32 1.1754944e-38, %v2336
  %v2338 = vsel %vm2335, %v2337, %v2333
  %v2339 = vmul.f32 1.0, %v2338
  %v2340 = vrcp.pop %v2000
  %v2341 = vmul.f32 %v2000, %v2340
  %v2342 = vsub.f32 1.0, %v2341
  %v2343 = vmul.f32 %v2340, %v2342
  %v2344 = vadd.f32 %v2340, %v2343
  %vm2345 = vweird.f32 %v2000
  %vm2346 = vweird.f32 %v2340
  %vm2347 = vmor %vm2345, %vm2346
  %v2348 = vsel %vm2347, %v2340, %v2344
  %v2349 = vand.u32 2147483647, %v2000
  %vm2350 = vcmp.eq.f32.partialorder %v2349, 8.507059e+37
  %v2351 = vand.u32 %v2000, 2147483648
  %v2352 = vor.u32 1.1754944e-38, %v2351
  %v2353 = vsel %vm2350, %v2352, %v2348
  %v2354 = vmul.f32 1.0, %v2353
  %v2355 = vrcp.pop %v2001
  %v2356 = vmul.f32 %v2001, %v2355
  %v2357 = vsub.f32 1.0, %v2356
  %v2358 = vmul.f32 %v2355, %v2357
  %v2359 = vadd.f32 %v2355, %v2358
  %vm2360 = vweird.f32 %v2001
  %vm2361 = vweird.f32 %v2355
  %vm2362 = vmor %vm2360, %vm2361
  %v2363 = vsel %vm2362, %v2355, %v2359
  %v2364 = vand.u32 2147483647, %v2001
  %vm2365 = vcmp.eq.f32.partialorder %v2364, 8.507059e+37
  %v2366 = vand.u32 %v2001, 2147483648
  %v2367 = vor.u32 1.1754944e-38, %v2366
  %v2368 = vsel %vm2365, %v2367, %v2363
  %v2369 = vmul.f32 1.0, %v2368
  %v2370 = vrcp.pop %v2002
  %v2371 = vmul.f32 %v2002, %v2370
  %v2372 = vsub.f32 1.0, %v2371
  %v2373 = vmul.f32 %v2370, %v2372
  %v2374 = vadd.f32 %v2370, %v2373
  %vm2375 = vweird.f32 %v2002
  %vm2376 = vweird.f32 %v2370
  %vm2377 = vmor %vm2375, %vm2376
  %v2378 = vsel %vm2377, %v2370, %v2374
  %v2379 = vand.u32 2147483647, %v2002
  %vm2380 = vcmp.eq.f32.partialorder %v2379, 8.507059e+37
  %v2381 = vand.u32 %v2002, 2147483648
  %v2382 = vor.u32 1.1754944e-38, %v2381
  %v2383 = vsel %vm2380, %v2382, %v2378
  %v2384 = vmul.f32 1.0, %v2383
  %v2385 = vrcp.pop %v2003
  %v2386 = vmul.f32 %v2003, %v2385
  %v2387 = vsub.f32 1.0, %v2386
  %v2388 = vmul.f32 %v2385, %v2387
  %v2389 = vadd.f32 %v2385, %v2388
  %vm2390 = vweird.f32 %v2003
  %vm2391 = vweird.f32 %v2385
  %vm2392 = vmor %vm2390, %vm2391
  %v2393 = vsel %vm2392, %v2385, %v2389
  %v2394 = vand.u32 2147483647, %v2003
  %vm2395 = vcmp.eq.f32.partialorder %v2394, 8.507059e+37
  %v2396 = vand.u32 %v2003, 2147483648
  %v2397 = vor.u32 1.1754944e-38, %v2396
  %v2398 = vsel %vm2395, %v2397, %v2393
  %v2399 = vmul.f32 1.0, %v2398
  %v2400 = vrcp.pop %v2004
  %v2401 = vmul.f32 %v2004, %v2400
  %v2402 = vsub.f32 1.0, %v2401
  %v2403 = vmul.f32 %v2400, %v2402
  %v2404 = vadd.f32 %v2400, %v2403
  %vm2405 = vweird.f32 %v2004
  %vm2406 = vweird.f32 %v2400
  %vm2407 = vmor %vm2405, %vm2406
  %v2408 = vsel %vm2407, %v2400, %v2404
  %v2409 = vand.u32 2147483647, %v2004
  %vm2410 = vcmp.eq.f32.partialorder %v2409, 8.507059e+37
  %v2411 = vand.u32 %v2004, 2147483648
  %v2412 = vor.u32 1.1754944e-38, %v2411
  %v2413 = vsel %vm2410, %v2412, %v2408
  %v2414 = vmul.f32 1.0, %v2413
  %v2415 = vrcp.pop %v2005
  %v2416 = vmul.f32 %v2005, %v2415
  %v2417 = vsub.f32 1.0, %v2416
  %v2418 = vmul.f32 %v2415, %v2417
  %v2419 = vadd.f32 %v2415, %v2418
  %vm2420 = vweird.f32 %v2005
  %vm2421 = vweird.f32 %v2415
  %vm2422 = vmor %vm2420, %vm2421
  %v2423 = vsel %vm2422, %v2415, %v2419
  %v2424 = vand.u32 2147483647, %v2005
  %vm2425 = vcmp.eq.f32.partialorder %v2424, 8.507059e+37
  %v2426 = vand.u32 %v2005, 2147483648
  %v2427 = vor.u32 1.1754944e-38, %v2426
  %v2428 = vsel %vm2425, %v2427, %v2423
  %v2429 = vmul.f32 1.0, %v2428
  %v2430 = vrcp.pop %v2006
  %v2431 = vmul.f32 %v2006, %v2430
  %v2432 = vsub.f32 1.0, %v2431
  %v2433 = vmul.f32 %v2430, %v2432
  %v2434 = vadd.f32 %v2430, %v2433
  %vm2435 = vweird.f32 %v2006
  %vm2436 = vweird.f32 %v2430
  %vm2437 = vmor %vm2435, %vm2436
  %v2438 = vsel %vm2437, %v2430, %v2434
  %v2439 = vand.u32 2147483647, %v2006
  %vm2440 = vcmp.eq.f32.partialorder %v2439, 8.507059e+37
  %v2441 = vand.u32 %v2006, 2147483648
  %v2442 = vor.u32 1.1754944e-38, %v2441
  %v2443 = vsel %vm2440, %v2442, %v2438
  %v2444 = vmul.f32 1.0, %v2443
  %v2445 = vrcp.pop %v2007
  %v2446 = vmul.f32 %v2007, %v2445
  %v2447 = vsub.f32 1.0, %v2446
  %v2448 = vmul.f32 %v2445, %v2447
  %v2449 = vadd.f32 %v2445, %v2448
  %vm2450 = vweird.f32 %v2007
  %vm2451 = vweird.f32 %v2445
  %vm2452 = vmor %vm2450, %vm2451
  %v2453 = vsel %vm2452, %v2445, %v2449
  %v2454 = vand.u32 2147483647, %v2007
  %vm2455 = vcmp.eq.f32.partialorder %v2454, 8.507059e+37
  %v2456 = vand.u32 %v2007, 2147483648
  %v2457 = vor.u32 1.1754944e-38, %v2456
  %v2458 = vsel %vm2455, %v2457, %v2453
  %v2459 = vmul.f32 1.0, %v2458
  %v2460 = vrcp.pop %v2008
  %v2461 = vmul.f32 %v2008, %v2460
  %v2462 = vsub.f32 1.0, %v2461
  %v2463 = vmul.f32 %v2460, %v2462
  %v2464 = vadd.f32 %v2460, %v2463
  %vm2465 = vweird.f32 %v2008
  %vm2466 = vweird.f32 %v2460
  %vm2467 = vmor %vm2465, %vm2466
  %v2468 = vsel %vm2467, %v2460, %v2464
  %v2469 = vand.u32 2147483647, %v2008
  %vm2470 = vcmp.eq.f32.partialorder %v2469, 8.507059e+37
  %v2471 = vand.u32 %v2008, 2147483648
  %v2472 = vor.u32 1.1754944e-38, %v2471
  %v2473 = vsel %vm2470, %v2472, %v2468
  %v2474 = vmul.f32 1.0, %v2473
  %v2475 = vrcp.pop %v2009
  %v2476 = vmul.f32 %v2009, %v2475
  %v2477 = vsub.f32 1.0, %v2476
  %v2478 = vmul.f32 %v2475, %v2477
  %v2479 = vadd.f32 %v2475, %v2478
  %vm2480 = vweird.f32 %v2009
  %vm2481 = vweird.f32 %v2475
  %vm2482 = vmor %vm2480, %vm2481
  %v2483 = vsel %vm2482, %v2475, %v2479
  %v2484 = vand.u32 2147483647, %v2009
  %vm2485 = vcmp.eq.f32.partialorder %v2484, 8.507059e+37
  %v2486 = vand.u32 %v2009, 2147483648
  %v2487 = vor.u32 1.1754944e-38, %v2486
  %v2488 = vsel %vm2485, %v2487, %v2483
  %v2489 = vmul.f32 1.0, %v2488
  %v2490 = vpack.c.bf16 %v2024, %v2024
  %v2491 = vpack.c.bf16 %v2039, %v2039
  %v2492 = vpack.c.bf16 %v2054, %v2054
  %v2493 = vpack.c.bf16 %v2069, %v2069
  %v2494 = vpack.c.bf16 %v2084, %v2084
  %v2495 = vpack.c.bf16 %v2099, %v2099
  %v2496 = vpack.c.bf16 %v2114, %v2114
  %v2497 = vpack.c.bf16 %v2129, %v2129
  %v2498 = vpack.c.bf16 %v2144, %v2144
  %v2499 = vpack.c.bf16 %v2159, %v2159
  %v2500 = vpack.c.bf16 %v2174, %v2174
  %v2501 = vpack.c.bf16 %v2189, %v2189
  %v2502 = vpack.c.bf16 %v2204, %v2204
  %v2503 = vpack.c.bf16 %v2219, %v2219
  %v2504 = vpack.c.bf16 %v2234, %v2234
  %v2505 = vpack.c.bf16 %v2249, %v2249
  %v2506 = vpack.c.bf16 %v2264, %v2264
  %v2507 = vpack.c.bf16 %v2279, %v2279
  %v2508 = vpack.c.bf16 %v2294, %v2294
  %v2509 = vpack.c.bf16 %v2309, %v2309
  %v2510 = vpack.c.bf16 %v2324, %v2324
  %v2511 = vpack.c.bf16 %v2339, %v2339
  %v2512 = vpack.c.bf16 %v2354, %v2354
  %v2513 = vpack.c.bf16 %v2369, %v2369
  %v2514 = vpack.c.bf16 %v2384, %v2384
  %v2515 = vpack.c.bf16 %v2399, %v2399
  %v2516 = vpack.c.bf16 %v2414, %v2414
  %v2517 = vpack.c.bf16 %v2429, %v2429
  %v2518 = vpack.c.bf16 %v2444, %v2444
  %v2519 = vpack.c.bf16 %v2459, %v2459
  %v2520 = vpack.c.bf16 %v2474, %v2474
  %v2521 = vpack.c.bf16 %v2489, %v2489
  %2522 = vst [vmem:[%s3] sm:$0xf] %v2490
  %2523 = vst [vmem:[%s3 + $0x4] sm:$0xf] %v2491
  %2524 = vst [vmem:[%s3 + $0x8] sm:$0xf] %v2492
  %2525 = vst [vmem:[%s3 + $0xc] sm:$0xf] %v2493
  %2526 = vst [vmem:[%s3 + $0x10] sm:$0xf] %v2494
  %2527 = vst [vmem:[%s3 + $0x14] sm:$0xf] %v2495
  %2528 = vst [vmem:[%s3 + $0x18] sm:$0xf] %v2496
  %2529 = vst [vmem:[%s3 + $0x1c] sm:$0xf] %v2497
  %2530 = vst [vmem:[%s3 + $0x20] sm:$0xf] %v2498
  %2531 = vst [vmem:[%s3 + $0x24] sm:$0xf] %v2499
  %2532 = vst [vmem:[%s3 + $0x28] sm:$0xf] %v2500
  %2533 = vst [vmem:[%s3 + $0x2c] sm:$0xf] %v2501
  %2534 = vst [vmem:[%s3 + $0x30] sm:$0xf] %v2502
  %2535 = vst [vmem:[%s3 + $0x34] sm:$0xf] %v2503
  %2536 = vst [vmem:[%s3 + $0x38] sm:$0xf] %v2504
  %2537 = vst [vmem:[%s3 + $0x3c] sm:$0xf] %v2505
  %2538 = vst [vmem:[%s3 + $0x40] sm:$0xf] %v2506
  %2539 = vst [vmem:[%s3 + $0x44] sm:$0xf] %v2507
  %2540 = vst [vmem:[%s3 + $0x48] sm:$0xf] %v2508
  %2541 = vst [vmem:[%s3 + $0x4c] sm:$0xf] %v2509
  %2542 = vst [vmem:[%s3 + $0x50] sm:$0xf] %v2510
  %2543 = vst [vmem:[%s3 + $0x54] sm:$0xf] %v2511
  %2544 = vst [vmem:[%s3 + $0x58] sm:$0xf] %v2512
  %2545 = vst [vmem:[%s3 + $0x5c] sm:$0xf] %v2513
  %2546 = vst [vmem:[%s3 + $0x60] sm:$0xf] %v2514
  %2547 = vst [vmem:[%s3 + $0x64] sm:$0xf] %v2515
  %2548 = vst [vmem:[%s3 + $0x68] sm:$0xf] %v2516
  %2549 = vst [vmem:[%s3 + $0x6c] sm:$0xf] %v2517
  %2550 = vst [vmem:[%s3 + $0x70] sm:$0xf] %v2518
  %2551 = vst [vmem:[%s3 + $0x74] sm:$0xf] %v2519
  %2552 = vst [vmem:[%s3 + $0x78] sm:$0xf] %v2520
  %2553 = vst [vmem:[%s3 + $0x7c] sm:$0xf] %v2521
  // Predicated region
  $region14: #{_omoe_forward.1} parent=0 // pred_check
    _
  $region15: #{_omoe_forward.1} parent=0 // pred_check_branch
    %2555 = sbr.rel (0) target = $region17
  $region16: #{_omoe_forward.1} parent=0 // pred_region
    _
  $region17: #{_omoe_forward.1} parent=0 // pred_fallthru
    _
  // Predicated region
  $region18: #{_omoe_forward.1} parent=0 // pred_check
    _
  $region19: #{_omoe_forward.1} parent=0 // pred_check_branch
    %2557 = sbr.rel (0) target = $region21
  $region20: #{_omoe_forward.1} parent=0 // pred_region
    _
  $region21: #{_omoe_forward.1} parent=0 // pred_fallthru
    _

</llo_original>
